<compile_context>
chip_gen: v7x
topology: tpu7x:2x2x1
jax: 0.10.0
libtpu: 0.0.40
codegen_flags: <defaults>
</compile_context>

<pallas_src>
import functools

import jax
import jax.numpy as jnp
from jax import lax
from jax.experimental import pallas as pl
from jax.experimental.pallas import tpu as pltpu


def _krasulina_kernel(x_ref, pinvT_ref, ct_ref, delta_ref, acc_ref, *,
                      base_eta, approx_recip):
    step = pl.program_id(1)

    @pl.when(step == 0)
    def _init():
        acc_ref[...] = jnp.zeros_like(acc_ref)

    x = x_ref[...]                      # [tb, F]  compute dtype (bf16 / f32)
    cd = x.dtype

    # latent = x @ C_cross.T  (single MXU-native matmul, f32 accumulation).
    latent = jnp.dot(x, pinvT_ref[...],
                     preferred_element_type=jnp.float32)        # [tb, K] f32

    # recon = latent @ C.T == latent @ Ct
    recon = jnp.dot(latent.astype(cd), ct_ref[...],
                    preferred_element_type=jnp.float32)         # [tb, F] f32

    # Elementwise math in f32 (v5e VPU/EUP have no bf16 support).
    residual = x.astype(jnp.float32) - recon                    # [tb, F] f32
    norm = jnp.sqrt(jnp.sum(latent * latent, axis=1, keepdims=True))
    denom = 1.0 + base_eta * norm
    if approx_recip:
        alpha = base_eta * pl.reciprocal(denom, approx=True)    # EUP slot
    else:
        alpha = base_eta / denom                                # exact (default)
    scaled = alpha * residual                                   # [tb, F] f32

    # delta^T += latent^T @ (alpha * residual)   -> [K, F], f32 accumulator.
    # TODO(synk): confirm with pl.lower_as_mlir that Mosaic does not emit a
    # large per-step vxpose here (K is small, so the XLU cost is minor if so).
    acc_ref[...] += lax.dot_general(
        latent.astype(cd), scaled.astype(cd),
        (((0,), (0,)), ((), ())), preferred_element_type=jnp.float32)

    @pl.when(step == pl.num_programs(1) - 1)
    def _finalize():
        delta_ref[...] = acc_ref[...]                           # lane-dense store


def _plan_tiles(batch, n_features, x_itemsize, num_splits, block_b=None,
                vmem_frac=0.70):
    """Pick the per-core batch tile and padded batch size.

    Budgets ~6 tb*F slabs (double-buffered x in its streaming dtype plus the
    f32 upcast / recon / residual / scaled temporaries) against a fraction of
    the physical VMEM, so tiles land in the HBM-roofline range on v5e/v6e
    (128 MiB) without overflowing v7x (64 MiB per TensorCore).
    """
    try:
        vmem_bytes = int(pltpu.get_tpu_info().vmem_capacity_bytes)
    except Exception:
        vmem_bytes = 64 << 20          # conservative default (v7x per-core)

    granule = 16 if x_itemsize < 4 else 8   # bf16 sublane packing -> 16 rows
    if block_b is None:
        per_row = n_features * (2 * x_itemsize + 4 * 4)
        cap = int(vmem_frac * vmem_bytes) // max(per_row, 1)
    else:
        cap = int(block_b)
    cap = max(granule, (cap // granule) * granule)

    per_split = -(-batch // num_splits)                  # rows per core
    per_split = -(-per_split // granule) * granule       # round up to granule
    tb = min(cap, per_split)
    tb = max(granule, (tb // granule) * granule)
    if block_b is None and per_split % tb:
        # Prefer a tile that exactly divides the per-core row count so the
        # zero-padded tail (extra HBM traffic) is avoided when possible.
        t = tb
        while t > granule and per_split % t:
            t -= granule
        if per_split % t == 0:
            tb = t
    steps = -(-per_split // tb)
    return tb, steps, num_splits * steps * tb, vmem_bytes


def krasulina_step(x, Ct, inv_gram, base_eta=10.0, *,
                   compute_dtype=jnp.bfloat16, num_splits=2, block_b=None,
                   approx_recip=False):
    """One Krasulina PCA update.

    State layout (kernel-friendly, equivalent to the PyTorch buffers, f32):
      Ct       = C.T           [K, F]
      inv_gram = inv(C.T @ C)  [K, K]     (C_cross == inv_gram @ Ct)

    `compute_dtype` is the MXU streaming dtype for x / Ct / C_cross.T
    (bf16 by default — ideally the caller already provides bf16 x so the cast
    is a no-op); the C update itself is accumulated and applied in f32.
    Returns (Ct_new, inv_gram_new).
    """
    B, F = x.shape
    K = Ct.shape[0]
    num_splits = max(1, int(num_splits))
    cd = jnp.dtype(compute_dtype)

    tb, steps, b_pad, vmem_bytes = _plan_tiles(B, F, cd.itemsize, num_splits,
                                               block_b)

    # C_cross.T = C @ inv(C^T C) = Ct.T @ inv_gram   (inv_gram is symmetric).
    pinvT = jnp.dot(Ct.T, inv_gram).astype(cd)          # [F, K], resident
    Ct_c = Ct.astype(cd)                                # [K, F], resident

    x_c = x.astype(cd)                                  # bf16 HBM stream
    if b_pad > B:
        # Zero rows give latent = residual = 0 -> exactly zero contribution.
        x_c = jnp.pad(x_c, ((0, b_pad - B), (0, 0)))

    kernel = functools.partial(_krasulina_kernel, base_eta=float(base_eta),
                               approx_recip=bool(approx_recip))

    delta = pl.pallas_call(
        kernel,
        out_shape=jax.ShapeDtypeStruct((num_splits, K, F), jnp.float32),
        grid_spec=pltpu.PrefetchScalarGridSpec(
            num_scalar_prefetch=0,
            grid=(num_splits, steps),
            in_specs=[
                # x: the dominant HBM stream (double-buffered by Pallas).
                # TODO(synk): sweep pipeline_mode=pl.Buffered(3) with an xprof
                # trace and keep it only if DMA is still exposed.
                pl.BlockSpec((tb, F), lambda c, i: (c * steps + i, 0)),
                pl.BlockSpec((F, K), lambda c, i: (0, 0)),   # pinvT (resident)
                pl.BlockSpec((K, F), lambda c, i: (0, 0)),   # Ct    (resident)
            ],
            # Per-core partial delta (leading axis squeezed inside the kernel).
            out_specs=pl.BlockSpec((None, K, F), lambda c, i: (c, 0, 0)),
            scratch_shapes=[pltpu.VMEM((K, F), jnp.float32)],
        ),
        compiler_params=pltpu.CompilerParams(
            # Leading split axis shards across v7x's two TensorCores; the
            # batch axis is the reduction.
            dimension_semantics=("parallel", "arbitrary"),
            vmem_limit_bytes=int(0.85 * vmem_bytes),
        ),
    )(x_c, pinvT, Ct_c)

    # Tiny epilogue in plain XLA (O(K*F) add + O(K^2*F) gram).
    # TODO(synk): the K x K matrix inverse has no clean Pallas equivalent; it
    # is the only piece of the forward left outside the kernel.
    Ct_new = Ct + jnp.sum(delta, axis=0)
    gram_new = jnp.dot(Ct_new, Ct_new.T)
    inv_gram_new = jnp.linalg.inv(gram_new)
    return Ct_new, inv_gram_new


def _reference_step(x, C, C_cross, base_eta=10.0):
    latent = x @ C_cross.T
    residual = x - latent @ C.T
    alpha = base_eta / (1.0 + base_eta * jnp.linalg.norm(latent, axis=1))
    C_new = C + (alpha[:, None] * residual).T @ latent
    C_cross_new = jnp.linalg.inv(C_new.T @ C_new) @ C_new.T
    return C_new, C_cross_new


if __name__ == "__main__":
    key = jax.random.PRNGKey(0)
    k_c, k_x = jax.random.split(key)

    B = 64
    n_features = 32
    n_components = 8
    base_eta = 10.0

    # Deterministic buffer init (mirrors __init__): C ~ randn,
    # C_cross = inv(C^T C) @ C^T.
    C0 = jax.random.normal(k_c, (n_features, n_components), dtype=jnp.float32)
    gram0 = C0.T @ C0
    inv_gram0 = jnp.linalg.inv(gram0)
    C_cross0 = inv_gram0 @ C0.T

    x = jax.random.normal(k_x, (B, n_features), dtype=jnp.float32)
    Ct0 = C0.T

    # Pure-JAX f32 reference (mirrors the PyTorch forward).
    C_ref, C_cross_ref = _reference_step(x, C0, C_cross0, base_eta)

    # ---- f32 path, exact reciprocal, forced small tile: exercises the
    #      multi-step accumulator (init / accumulate / finalize) and the
    #      2-way core split. Tight check vs. the f32 reference.
    step_f32 = jax.jit(functools.partial(
        krasulina_step, base_eta=base_eta, compute_dtype=jnp.float32,
        num_splits=2, block_b=16, approx_recip=False))
    Ct_f32, ig_f32 = step_f32(x, Ct0, inv_gram0)
    jax.block_until_ready((Ct_f32, ig_f32))
    C_f32 = Ct_f32.T
    C_cross_f32 = ig_f32 @ Ct_f32
    assert jnp.allclose(C_f32, C_ref, atol=1e-2, rtol=1e-2), "C mismatch (f32)"
    assert jnp.allclose(C_cross_f32, C_cross_ref, atol=1e-2, rtol=1e-1), \
        "C_cross mismatch (f32)"

    # ---- bf16 streaming path (production default): planner-chosen tile,
    #      approximate reciprocal. Looser drift check vs. the f32 reference,
    #      plus a tight self-consistency check of the recomputed pseudo-inverse.
    step_bf16 = jax.jit(functools.partial(
        krasulina_step, base_eta=base_eta, compute_dtype=jnp.bfloat16,
        num_splits=2, approx_recip=True))
    Ct_b, ig_b = step_bf16(x.astype(jnp.bfloat16), Ct0, inv_gram0)
    jax.block_until_ready((Ct_b, ig_b))
    C_b = Ct_b.T
    C_cross_b = ig_b @ Ct_b

    def rel_err(a, b):
        return float(jnp.linalg.norm(a - b) / jnp.linalg.norm(b))

    assert rel_err(C_b, C_ref) < 0.1, "C drift too large (bf16)"
    C_cross_cons = jnp.linalg.inv(C_b.T @ C_b) @ C_b.T
    assert rel_err(C_cross_b, C_cross_cons) < 1e-2, \
        "C_cross inconsistent with updated C (bf16)"

    print("KERNEL_OK")
</pallas_src>

<mosaic_0001>
module attributes {stable_mosaic.version = 11 : i64} {
  func.func @_krasulina_kernel(%arg0: i32, %arg1: i32, %arg2: memref<16x32xf32, #tpu.memory_space<vmem>>, %arg3: memref<32x8xf32, #tpu.memory_space<vmem>>, %arg4: memref<8x32xf32, #tpu.memory_space<vmem>>, %arg5: memref<1x8x32xf32, #tpu.memory_space<vmem>>, %arg6: memref<8x32xf32, #tpu.memory_space<vmem>>) attributes {dimension_semantics = [#tpu.dimension_semantics<parallel>, #tpu.dimension_semantics<arbitrary>], iteration_bounds = array<i64: 2, 2>, scalar_prefetch = 0 : i64, scratch_operands = 1 : i64, tpu.core_type = #tpu.core_type<tc>, window_params = [{transform_indices = @transform_0, window_bounds = array<i64: 16, 32>}, {pipeline_mode = #tpu.pipeline_mode<synchronous>, transform_indices = @transform_1, window_bounds = array<i64: 32, 8>}, {pipeline_mode = #tpu.pipeline_mode<synchronous>, transform_indices = @transform_2, window_bounds = array<i64: 8, 32>}, {transform_indices = @transform_3, window_bounds = array<i64: 1, 8, 32>}]} {
    %c0_i32 = arith.constant 0 : i32
    %0 = arith.cmpi eq, %arg1, %c0_i32 : i32
    %1 = arith.extui %0 : i1 to i32
    %c0_i32_0 = arith.constant 0 : i32
    %2 = arith.cmpi ne, %1, %c0_i32_0 : i32
    scf.if %2 {
      %cst_17 = arith.constant 0.000000e+00 : f32
      %28 = vector.broadcast %cst_17 : f32 to vector<8x32xf32>
      %c0_18 = arith.constant 0 : index
      %c0_19 = arith.constant 0 : index
      %29 = vector.load %arg6[%c0_18, %c0_19] : memref<8x32xf32, #tpu.memory_space<vmem>>, vector<8x32xf32>
      tpu.vector_store %arg6[%c0_18, %c0_19], %28 {strides = array<i32>} : memref<8x32xf32, #tpu.memory_space<vmem>>, vector<8x32xf32>,
    } else {
    }
    %c0 = arith.constant 0 : index
    %c0_1 = arith.constant 0 : index
    %3 = vector.load %arg2[%c0, %c0_1] : memref<16x32xf32, #tpu.memory_space<vmem>>, vector<16x32xf32>
    %c0_2 = arith.constant 0 : index
    %c0_3 = arith.constant 0 : index
    %4 = vector.load %arg3[%c0_2, %c0_3] : memref<32x8xf32, #tpu.memory_space<vmem>>, vector<32x8xf32>
    %cst = arith.constant dense<0.000000e+00> : vector<16x8xf32>
    %5 = tpu.matmul %3, %4, %cst {dimension_numbers = #tpu.dot_dimension_numbers<[1], [0], [0], [1], [0, 0, 1, 1], [], []>} : vector<16x32xf32>, vector<32x8xf32>, vector<16x8xf32> -> vector<16x8xf32>
    %c0_4 = arith.constant 0 : index
    %c0_5 = arith.constant 0 : index
    %6 = vector.load %arg4[%c0_4, %c0_5] : memref<8x32xf32, #tpu.memory_space<vmem>>, vector<8x32xf32>
    %cst_6 = arith.constant dense<0.000000e+00> : vector<16x32xf32>
    %7 = tpu.matmul %5, %6, %cst_6 {dimension_numbers = #tpu.dot_dimension_numbers<[1], [0], [0], [1], [0, 0, 1, 1], [], []>} : vector<16x8xf32>, vector<8x32xf32>, vector<16x32xf32> -> vector<16x32xf32>
    %8 = arith.subf %3, %7 : vector<16x32xf32>
    %9 = arith.mulf %5, %5 : vector<16x8xf32>
    %cst_7 = arith.constant dense<0.000000e+00> : vector<16xf32>
    %10 = vector.multi_reduction <add>, %9, %cst_7 [1] : vector<16x8xf32> to vector<16xf32>
    %11 = vector.shape_cast %10 : vector<16xf32> to vector<16x1xf32>
    %12 = math.sqrt %11 : vector<16x1xf32>
    %cst_8 = arith.constant 1.000000e+01 : f32
    %13 = vector.broadcast %cst_8 : f32 to vector<16x1xf32>
    %14 = arith.mulf %13, %12 : vector<16x1xf32>
    %cst_9 = arith.constant 1.000000e+00 : f32
    %15 = vector.broadcast %cst_9 : f32 to vector<16x1xf32>
    %16 = arith.addf %15, %14 : vector<16x1xf32>
    %cst_10 = arith.constant 1.000000e+01 : f32
    %17 = vector.broadcast %cst_10 : f32 to vector<16x1xf32>
    %18 = arith.divf %17, %16 : vector<16x1xf32>
    %19 = vector.broadcast %18 : vector<16x1xf32> to vector<16x32xf32>
    %20 = arith.mulf %19, %8 : vector<16x32xf32>
    %c0_11 = arith.constant 0 : index
    %c0_12 = arith.constant 0 : index
    %21 = vector.load %arg6[%c0_11, %c0_12] : memref<8x32xf32, #tpu.memory_space<vmem>>, vector<8x32xf32>
    %cst_13 = arith.constant dense<0.000000e+00> : vector<8x32xf32>
    %22 = tpu.matmul %5, %20, %cst_13 {dimension_numbers = #tpu.dot_dimension_numbers<[0], [0], [1], [1], [0, 1, 1, 1], [], []>} : vector<16x8xf32>, vector<16x32xf32>, vector<8x32xf32> -> vector<8x32xf32>
    %23 = arith.addf %21, %22 : vector<8x32xf32>
    %c0_14 = arith.constant 0 : index
    %c0_15 = arith.constant 0 : index
    %24 = vector.load %arg6[%c0_14, %c0_15] : memref<8x32xf32, #tpu.memory_space<vmem>>, vector<8x32xf32>
    tpu.vector_store %arg6[%c0_14, %c0_15], %23 {strides = array<i32>} : memref<8x32xf32, #tpu.memory_space<vmem>>, vector<8x32xf32>,
    %c1_i32 = arith.constant 1 : i32
    %25 = arith.cmpi eq, %arg1, %c1_i32 : i32
    %26 = arith.extui %25 : i1 to i32
    %c0_i32_16 = arith.constant 0 : i32
    %27 = arith.cmpi ne, %26, %c0_i32_16 : i32
    scf.if %27 {
      %c0_17 = arith.constant 0 : index
      %c0_18 = arith.constant 0 : index
      %28 = vector.load %arg6[%c0_17, %c0_18] : memref<8x32xf32, #tpu.memory_space<vmem>>, vector<8x32xf32>
      %c0_19 = arith.constant 0 : index
      %c0_20 = arith.constant 0 : index
      %c0_21 = arith.constant 0 : index
      %29 = vector.load %arg5[%c0_19, %c0_20, %c0_21] : memref<1x8x32xf32, #tpu.memory_space<vmem>>, vector<1x8x32xf32>
      %30 = vector.shape_cast %29 : vector<1x8x32xf32> to vector<8x32xf32>
      %31 = vector.shape_cast %28 : vector<8x32xf32> to vector<1x8x32xf32>
      tpu.vector_store %arg5[%c0_19, %c0_20, %c0_21], %31 {strides = array<i32>} : memref<1x8x32xf32, #tpu.memory_space<vmem>>, vector<1x8x32xf32>,
    } else {
    }
    return
  }
  func.func @transform_0(%arg0: i32, %arg1: i32) -> (i32, i32) {
    %c2_i32 = arith.constant 2 : i32
    %0 = arith.muli %arg0, %c2_i32 : i32
    %1 = arith.addi %0, %arg1 : i32
    %c0_i32 = arith.constant 0 : i32
    %c0_i32_0 = arith.constant 0 : i32
    return %1, %c0_i32 : i32, i32
  }
  func.func @transform_1(%arg0: i32, %arg1: i32) -> (i32, i32) {
    %c0_i32 = arith.constant 0 : i32
    %c0_i32_0 = arith.constant 0 : i32
    %c0_i32_1 = arith.constant 0 : i32
    return %c0_i32, %c0_i32_0 : i32, i32
  }
  func.func @transform_2(%arg0: i32, %arg1: i32) -> (i32, i32) {
    %c0_i32 = arith.constant 0 : i32
    %c0_i32_0 = arith.constant 0 : i32
    %c0_i32_1 = arith.constant 0 : i32
    return %c0_i32, %c0_i32_0 : i32, i32
  }
  func.func @transform_3(%arg0: i32, %arg1: i32) -> (i32, i32, i32) {
    %c0_i32 = arith.constant 0 : i32
    %c0_i32_0 = arith.constant 0 : i32
    %c0_i32_1 = arith.constant 0 : i32
    return %arg0, %c0_i32, %c0_i32_0 : i32, i32, i32
  }
}

</mosaic_0001>

<llo_original>
// kernel: custom-call.11
$region0: #{custom-call.11}
  %s0 = inlined_call_operand.vmem [shape: f32[8,8], index: 0, kind: input, shape index: {}]
  %s1 = inlined_call_operand.vmem [shape: f32[8,8], index: 1, kind: output, shape index: {0}]
  %s2 = inlined_call_operand.hbm [shape: s32[8], index: 2, kind: output, shape index: {1}]
  %s3 = inlined_call_operand.vmem [shape: s32[8], index: 3, kind: output, shape index: {2}]
  %4 = xla_tuple %s1, %s2, %s3
  $region1: #{custom-call.11} parent=0
    #allocation0 [shape = 'u8[4096]{0}', space=vmem, size = 0x1000, scoped, tag = 'operand span for operand 0']
    #allocation1 [shape = 'u8[4096]{0}', space=vmem, size = 0x1000, scoped, tag = 'operand span for operand 1']
    #allocation2 [shape = 'u8[4096]{0}', space=vmem, size = 0x1000, scoped, tag = 'operand span for operand 2']
    #allocation3 [shape = 'u8[512]{0}', space=vmem, size = 0x400, scoped, tag = 'packed  for operand 2']
    #allocation4 [shape = 's32[1]{0}', space=sflag, size = 0x4, scoped, tag = 'scoped memory for custom-call.11']
    #allocation5 [shape = 'u8[4096]{0}', space=vmem, size = 0x1000, scoped, tag = 'operand span for operand 3']
    #allocation6 [shape = 'u8[512]{0}', space=vmem, size = 0x400, scoped, tag = 'packed  for operand 3']
    #allocation7 [shape = 's32[8,128]{1,0}', space=vmem, size = 0x1000, scoped, tag = 'scratch for permutations']
    %5 = vsyncpa [#allocation4], 0
    %p7 = scmp.gt.s32.totalorder 8, 0
    // Predicated region
    $region2: #{custom-call.11} parent=1 // pred_check
      %p8 = pneg %p7
    $region3: #{custom-call.11} parent=1 // pred_check_branch
      %10 = sbr.rel (%p8) target = $region5
    $region4: #{custom-call.11} parent=1 // pred_region
      %s11 = sshra.s32 8, 3
      %p12 = scmp.gt.s32.totalorder %s11, 0
      // Predicated region
      $region6: #{custom-call.11} parent=4 // pred_check
        %p13 = pneg %p12
      $region7: #{custom-call.11} parent=4 // pred_check_branch
        %15 = sbr.rel (%p13) target = $region9
      $region8: #{custom-call.11} parent=4 // pred_region
        %s16 = ssub.s32 %s11, 1
        %s17 = smul.u32 %s16, 128
        %s18 = sshra.s32 %s17, 4
        %s19 = scalar_lea.vmem %s0, %s18
        %v20 = vld [vmem:[%s0] sm:$0xff]
        // While loop
        $region10: #{custom-call.11} parent=8 // loop_pre_header
          _
        $region11: #{custom-call.11} parent=8 // loop_header
          %s21 = sphi %s0, %s43
          %s22 = sphi [#allocation0], %s44
          %v23 = vphi %v20, %v45
          %s24 = ssub.s32 %s19, 64
          %p25 = scmp.gt.s32.totalorder %s21, %s24
        $region12: #{custom-call.11} parent=8 // loop_header_branch
          %27 = sbr.rel (%p25) target = $region16
        $region13: #{custom-call.11} parent=8 // loop_body
          %28 = vst [vmem:[%s22] sm:$0xff] %v23
          %v29 = vld [vmem:[%s21 + $0x8] sm:$0xff]
          %30 = vst [vmem:[%s22 + $0x8] sm:$0xff] %v29
          %v31 = vld [vmem:[%s21 + $0x10] sm:$0xff]
          %32 = vst [vmem:[%s22 + $0x10] sm:$0xff] %v31
          %v33 = vld [vmem:[%s21 + $0x18] sm:$0xff]
          %34 = vst [vmem:[%s22 + $0x18] sm:$0xff] %v33
          %v35 = vld [vmem:[%s21 + $0x20] sm:$0xff]
          %36 = vst [vmem:[%s22 + $0x20] sm:$0xff] %v35
          %v37 = vld [vmem:[%s21 + $0x28] sm:$0xff]
          %38 = vst [vmem:[%s22 + $0x28] sm:$0xff] %v37
          %v39 = vld [vmem:[%s21 + $0x30] sm:$0xff]
          %40 = vst [vmem:[%s22 + $0x30] sm:$0xff] %v39
          %v41 = vld [vmem:[%s21 + $0x38] sm:$0xff]
          %42 = vst [vmem:[%s22 + $0x38] sm:$0xff] %v41
        $region14: #{custom-call.11} parent=8 // loop_footer
          %s43 = scalar_lea.vmem %s21, 64
          %s44 = scalar_lea.vmem %s22, 64
          %v45 = vld [vmem:[%s21 + $0x40] sm:$0xff]
        $region15: #{custom-call.11} parent=8 // loop_footer_branch
          %46 = sbr.rel target = $region11
        $region16: #{custom-call.11} parent=8 // loop_exit
          _
        // While loop
        $region17: #{custom-call.11} parent=8 // loop_pre_header
          _
        $region18: #{custom-call.11} parent=8 // loop_header
          %s47 = sphi %s21, %s55
          %s48 = sphi %s22, %s56
          %v49 = vphi %v23, %v49
          %p50 = scmp.gt.s32.totalorder %s47, %s19
        $region19: #{custom-call.11} parent=8 // loop_header_branch
          %52 = sbr.rel (%p50) target = $region23
        $region20: #{custom-call.11} parent=8 // loop_body
          %v53 = vld [vmem:[%s47] sm:$0xff]
          %54 = vst [vmem:[%s48] sm:$0xff] %v53
        $region21: #{custom-call.11} parent=8 // loop_footer
          %s55 = scalar_lea.vmem %s47, 8
          %s56 = scalar_lea.vmem %s48, 8
        $region22: #{custom-call.11} parent=8 // loop_footer_branch
          %57 = sbr.rel target = $region18
        $region23: #{custom-call.11} parent=8 // loop_exit
          _
      $region9: #{custom-call.11} parent=4 // pred_fallthru
        _
      %s58 = sand.u32 8, 7
      %s59 = sshllo.u32 0, %s58
      %s60 = smul.u32 %s11, 128
      %s61 = sshra.s32 %s60, 4
      %s62 = scalar_lea.vmem [#allocation0], %s61
      %s63 = smul.u32 %s11, 128
      %s64 = sshra.s32 %s63, 4
      %s65 = scalar_lea.vmem %s0, %s64
      %v66 = vld [vmem:[%s65] sm:%s59]
      %67 = vst [vmem:[%s62] sm:%s59] %v66
    $region5: #{custom-call.11} parent=1 // pred_fallthru
      _
    %v68 = vld [vmem:[#allocation0] sm:$0xff]
    %69 = vst [vmem:[#allocation1] sm:$0xff] %v68
    %70 = vst [vmem:[#allocation2] sm:$0x1] 0
    %v71 = vlaneseq
    %v72 = vshrl.u32 %v71, 7
    %v73 = vmov %v72
    %75 = vst [vmem:[#allocation7] sm:$0xff] %v73
    loop: start=0, step=1, limit=8
    $region25: #{custom-call.11} parent=1 // loop_pre_header
      _
    $region26: #{custom-call.11} parent=1 // loop_header
      %s77 = sphi 0, %s81
      %p78 = scmp.ge.s32.totalorder %s77, 8
    $region27: #{custom-call.11} parent=1 // loop_header_branch
      %80 = sbr.rel (%p78) target = $region31
    $region28: #{custom-call.11} parent=1 // loop_body
      %v82 = vstv %s77
      %v83 = vlaneseq
      %v84 = vshrl.u32 %v83, 7
      %v85 = vmov %v84
      %v86 = vld [vmem:[#allocation1] sm:$0xff]
      %v87 = vand.u32 2147483647, %v86
      %v89 = vstv %s77
      %vm90 = vcmp.ge.s32.totalorder %v85, %v89
      %vm91 = vcmp.lt.s32.totalorder %v85, 8
      %vm92 = vmand %vm90, %vm91
      %vm93 = vcmp.lt.f32.partialorder -inf, %v87
      %vm94 = vmand %vm92, %vm93
      %v95 = vsel %vm94, %v85, %v82
      %v96 = vsel %vm94, %v87, -inf
      %v97 = vrot.slane %v96, 1
      %v98 = vrot.slane %v95, 1
      %vm99 = vcmp.ge.f32.partialorder %v97, %v96
      %v100 = vsel %vm99, %v97, %v96
      %v101 = vsel %vm99, %v98, %v95
      %v102 = vrot.slane %v97, 1
      %v103 = vrot.slane %v98, 1
      %vm104 = vcmp.ge.f32.partialorder %v102, %v100
      %v105 = vsel %vm104, %v102, %v100
      %v106 = vsel %vm104, %v103, %v101
      %v107 = vrot.slane %v102, 1
      %v108 = vrot.slane %v103, 1
      %vm109 = vcmp.ge.f32.partialorder %v107, %v105
      %v110 = vsel %vm109, %v107, %v105
      %v111 = vsel %vm109, %v108, %v106
      %v112 = vrot.slane %v107, 1
      %v113 = vrot.slane %v108, 1
      %vm114 = vcmp.ge.f32.partialorder %v112, %v110
      %v115 = vsel %vm114, %v112, %v110
      %v116 = vsel %vm114, %v113, %v111
      %v117 = vrot.slane %v112, 1
      %v118 = vrot.slane %v113, 1
      %vm119 = vcmp.ge.f32.partialorder %v117, %v115
      %v120 = vsel %vm119, %v117, %v115
      %v121 = vsel %vm119, %v118, %v116
      %v122 = vrot.slane %v117, 1
      %v123 = vrot.slane %v118, 1
      %vm124 = vcmp.ge.f32.partialorder %v122, %v120
      %v125 = vsel %vm124, %v122, %v120
      %v126 = vsel %vm124, %v123, %v121
      %v127 = vrot.slane %v122, 1
      %v128 = vrot.slane %v123, 1
      %vm129 = vcmp.ge.f32.partialorder %v127, %v125
      %v130 = vsel %vm129, %v127, %v125
      %v131 = vsel %vm129, %v128, %v126
      %s132 = ssub.s32 128, %s77
      %133 = vrot.lane.b32.xlu0 %v131, %s132
      %v134 = vpop.permute.xlu0 %133
      %s135 = vtos %v134
      %v136 = vstv %s77
      %v137 = vlaneseq
      %v138 = vand.u32 %v137, 127
      %vm139 = vcmp.eq.s32.totalorder %v138, %v136
      %v140 = vstv %s135
      %v141 = vld [vmem:[#allocation2] ss:$0 sm:$0xff]
      %v142 = vsel %vm139, %v140, %v141
      %143 = vst [vmem:[#allocation2] sm:$0x1] %v142
      %s144 = scalar_lea.vmem [#allocation1], %s77
      %s145 = scalar_lea.vmem [#allocation1], %s135
      %v146 = vld [vmem:[%s144] ss:$0 sm:$0xff]
      %v147 = vld [vmem:[%s145] ss:$0 sm:$0xff]
      %148 = vst [vmem:[%s145] sm:$0x1] %v146
      %149 = vst [vmem:[%s144] sm:$0x1] %v147
      %s150 = scalar_lea.vmem [#allocation7], %s77
      %s151 = scalar_lea.vmem [#allocation7], %s135
      %v152 = vld [vmem:[%s150] ss:$0 sm:$0xff]
      %v153 = vld [vmem:[%s151] ss:$0 sm:$0xff]
      %154 = vst [vmem:[%s151] sm:$0x1] %v152
      %155 = vst [vmem:[%s150] sm:$0x1] %v153
      %vm156 = vcmp.ne.f32.partialorder %v147, 0.0
      %vm157 = vmand %vm139, %vm156
      %v158 = vsel %vm157, %v147, 1.0
      %v159 = vlaneseq
      %v160 = vand.u32 %v159, 127
      %v161 = vstv %s77
      %vm162 = vcmp.gt.s32.totalorder %v160, %v161
      %v163 = vsel %vm162, %v147, 0.0
      %v164 = vlaneseq
      %v165 = vshrl.u32 %v164, 7
      %v166 = vmov %v165
      %v167 = vld [vmem:[#allocation1] sm:$0xff]
      %v169 = vstv %s77
      %vm170 = vcmp.gt.s32.totalorder %v166, %v169
      %v171 = vsel %vm170, %v158, 1.0
      %v172 = vrcp.pop %v171
      %v173 = vmul.f32 %v167, %v172
      %vm174 = vmand %vm170, %vm139
      %v175 = vsel %vm174, %v173, 0.0
      %176 = vadd.xlane.f32.xlu0 %v175
      %v177 = vpop.xlane.xlu0 %176
      %v178 = vmul.f32 %v177, %v163
      %v179 = vsub.f32 %v173, %v178
      %180 = vst [vmem:[#allocation1] sm:$0xff] %v179
    $region29: #{custom-call.11} parent=1 // loop_footer
      %s81 = sadd.s32 1, %s77
    $region30: #{custom-call.11} parent=1 // loop_footer_branch
      %76 = sbr.rel target = $region26
    $region31: #{custom-call.11} parent=1 // loop_exit
      _
    %v181 = vld [vmem:[#allocation7] sm:$0xff]
    %s182 = scalar_lea.vmem [#allocation7], 8
    %s183 = scalar_lea.vmem [#allocation7], 16
    %s184 = scalar_lea.vmem [#allocation7], 24
    %s185 = scalar_lea.vmem [#allocation7], 32
    %s186 = scalar_lea.vmem [#allocation7], 40
    %s187 = scalar_lea.vmem [#allocation7], 48
    %s188 = scalar_lea.vmem [#allocation7], 56
    %s189 = scalar_lea.vmem [#allocation7], 64
    %s190 = scalar_lea.vmem [#allocation7], 72
    %s191 = scalar_lea.vmem [#allocation7], 80
    %s192 = scalar_lea.vmem [#allocation7], 88
    %s193 = scalar_lea.vmem [#allocation7], 96
    %s194 = scalar_lea.vmem [#allocation7], 104
    %s195 = scalar_lea.vmem [#allocation7], 112
    %s196 = scalar_lea.vmem [#allocation7], 120
    %197 = vxpose.xlu0.b32.start [1/16] %v181, 128
    %198 = vxpose.xlu0.b32.cont [2/16] 0, 128
    %199 = vxpose.xlu0.b32.cont [3/16] 0, 128
    %200 = vxpose.xlu0.b32.cont [4/16] 0, 128
    %201 = vxpose.xlu0.b32.cont [5/16] 0, 128
    %202 = vxpose.xlu0.b32.cont [6/16] 0, 128
    %203 = vxpose.xlu0.b32.cont [7/16] 0, 128
    %204 = vxpose.xlu0.b32.cont [8/16] 0, 128
    %205 = vxpose.xlu0.b32.cont [9/16] 0, 128
    %206 = vxpose.xlu0.b32.cont [10/16] 0, 128
    %207 = vxpose.xlu0.b32.cont [11/16] 0, 128
    %208 = vxpose.xlu0.b32.cont [12/16] 0, 128
    %209 = vxpose.xlu0.b32.cont [13/16] 0, 128
    %210 = vxpose.xlu0.b32.cont [14/16] 0, 128
    %211 = vxpose.xlu0.b32.cont [15/16] 0, 128
    %212 = vxpose.xlu0.b32.end [16/16] 0, 128
    %v213 = vpop.trf.xlu0
    %v214 = vpop.trf.xlu0
    %v215 = vpop.trf.xlu0
    %v216 = vpop.trf.xlu0
    %v217 = vpop.trf.xlu0
    %v218 = vpop.trf.xlu0
    %v219 = vpop.trf.xlu0
    %v220 = vpop.trf.xlu0
    %v221 = vpop.trf.xlu0
    %v222 = vpop.trf.xlu0
    %v223 = vpop.trf.xlu0
    %v224 = vpop.trf.xlu0
    %v225 = vpop.trf.xlu0
    %v226 = vpop.trf.xlu0
    %v227 = vpop.trf.xlu0
    %v228 = vpop.trf.xlu0
    %229 = vst [vmem:[#allocation5] sm:$0x1] %v213
    %s231 = sshllo.u32 0, 1
    %v233 = vld [vmem:[#allocation2] sm:%s231]
    %s234 = sshllo.u32 0, 1
    %235 = vst [vmem:[#allocation3] sm:%s234] %v233
    %s237 = sshllo.u32 0, 1
    %v239 = vld [vmem:[#allocation5] sm:%s237]
    %s240 = sshllo.u32 0, 1
    %241 = vst [vmem:[#allocation6] sm:%s240] %v239
    %p243 = scmp.gt.s32.totalorder 8, 0
    // Predicated region
    $region32: #{custom-call.11} parent=1 // pred_check
      %p244 = pneg %p243
    $region33: #{custom-call.11} parent=1 // pred_check_branch
      %246 = sbr.rel (%p244) target = $region35
    $region34: #{custom-call.11} parent=1 // pred_region
      %s247 = sshra.s32 8, 3
      %p248 = scmp.gt.s32.totalorder %s247, 0
      // Predicated region
      $region36: #{custom-call.11} parent=34 // pred_check
        %p249 = pneg %p248
      $region37: #{custom-call.11} parent=34 // pred_check_branch
        %251 = sbr.rel (%p249) target = $region39
      $region38: #{custom-call.11} parent=34 // pred_region
        %s252 = ssub.s32 %s247, 1
        %s253 = smul.u32 %s252, 128
        %s254 = sshra.s32 %s253, 4
        %s255 = scalar_lea.vmem [#allocation1], %s254
        %v256 = vld [vmem:[#allocation1] sm:$0xff]
        // While loop
        $region40: #{custom-call.11} parent=38 // loop_pre_header
          _
        $region41: #{custom-call.11} parent=38 // loop_header
          %s257 = sphi [#allocation1], %s279
          %s258 = sphi %s1, %s280
          %v259 = vphi %v256, %v281
          %s260 = ssub.s32 %s255, 64
          %p261 = scmp.gt.s32.totalorder %s257, %s260
        $region42: #{custom-call.11} parent=38 // loop_header_branch
          %263 = sbr.rel (%p261) target = $region46
        $region43: #{custom-call.11} parent=38 // loop_body
          %264 = vst [vmem:[%s258] sm:$0xff] %v259
          %v265 = vld [vmem:[%s257 + $0x8] sm:$0xff]
          %266 = vst [vmem:[%s258 + $0x8] sm:$0xff] %v265
          %v267 = vld [vmem:[%s257 + $0x10] sm:$0xff]
          %268 = vst [vmem:[%s258 + $0x10] sm:$0xff] %v267
          %v269 = vld [vmem:[%s257 + $0x18] sm:$0xff]
          %270 = vst [vmem:[%s258 + $0x18] sm:$0xff] %v269
          %v271 = vld [vmem:[%s257 + $0x20] sm:$0xff]
          %272 = vst [vmem:[%s258 + $0x20] sm:$0xff] %v271
          %v273 = vld [vmem:[%s257 + $0x28] sm:$0xff]
          %274 = vst [vmem:[%s258 + $0x28] sm:$0xff] %v273
          %v275 = vld [vmem:[%s257 + $0x30] sm:$0xff]
          %276 = vst [vmem:[%s258 + $0x30] sm:$0xff] %v275
          %v277 = vld [vmem:[%s257 + $0x38] sm:$0xff]
          %278 = vst [vmem:[%s258 + $0x38] sm:$0xff] %v277
        $region44: #{custom-call.11} parent=38 // loop_footer
          %s279 = scalar_lea.vmem %s257, 64
          %s280 = scalar_lea.vmem %s258, 64
          %v281 = vld [vmem:[%s257 + $0x40] sm:$0xff]
        $region45: #{custom-call.11} parent=38 // loop_footer_branch
          %282 = sbr.rel target = $region41
        $region46: #{custom-call.11} parent=38 // loop_exit
          _
        // While loop
        $region47: #{custom-call.11} parent=38 // loop_pre_header
          _
        $region48: #{custom-call.11} parent=38 // loop_header
          %s283 = sphi %s257, %s291
          %s284 = sphi %s258, %s292
          %v285 = vphi %v259, %v285
          %p286 = scmp.gt.s32.totalorder %s283, %s255
        $region49: #{custom-call.11} parent=38 // loop_header_branch
          %288 = sbr.rel (%p286) target = $region53
        $region50: #{custom-call.11} parent=38 // loop_body
          %v289 = vld [vmem:[%s283] sm:$0xff]
          %290 = vst [vmem:[%s284] sm:$0xff] %v289
        $region51: #{custom-call.11} parent=38 // loop_footer
          %s291 = scalar_lea.vmem %s283, 8
          %s292 = scalar_lea.vmem %s284, 8
        $region52: #{custom-call.11} parent=38 // loop_footer_branch
          %293 = sbr.rel target = $region48
        $region53: #{custom-call.11} parent=38 // loop_exit
          _
      $region39: #{custom-call.11} parent=34 // pred_fallthru
        _
      %s294 = sand.u32 8, 7
      %s295 = sshllo.u32 0, %s294
      %s296 = smul.u32 %s247, 128
      %s297 = sshra.s32 %s296, 4
      %s298 = scalar_lea.vmem %s1, %s297
      %s299 = smul.u32 %s247, 128
      %s300 = sshra.s32 %s299, 4
      %s301 = scalar_lea.vmem [#allocation1], %s300
      %v302 = vld [vmem:[%s301] sm:%s295]
      %303 = vst [vmem:[%s298] sm:%s295] %v302
    $region35: #{custom-call.11} parent=1 // pred_fallthru
      _
    // Predicated region
    $region54: #{custom-call.11} parent=1 // pred_check
      _
    $region55: #{custom-call.11} parent=1 // pred_check_branch
      %305 = sbr.rel (0) target = $region57
    $region56: #{custom-call.11} parent=1 // pred_region
      %s307 = ssub.s32 16, 16
      %308 = vsyncadd [#allocation4], %s307
      %s309 = sshll.u32 [#allocation3], 4
      %s310 = int_to_ptr.vmem [resolvable:$true] %s309
      %312 = dma.vmem_to_hbm [thread:$0]  %s310, 16, %s2, [#allocation4]
    $region57: #{custom-call.11} parent=1 // pred_fallthru
      _
    // Predicated region
    $region58: #{custom-call.11} parent=1 // pred_check
      _
    $region59: #{custom-call.11} parent=1 // pred_check_branch
      %314 = sbr.rel (0) target = $region61
    $region60: #{custom-call.11} parent=1 // pred_region
      %p316 = scmp.gt.s32.totalorder 1, 0
      // Predicated region
      $region62: #{custom-call.11} parent=60 // pred_check
        %p317 = pneg %p316
      $region63: #{custom-call.11} parent=60 // pred_check_branch
        %319 = sbr.rel (%p317) target = $region65
      $region64: #{custom-call.11} parent=60 // pred_region
        %s320 = sshra.s32 1, 3
        %p321 = scmp.gt.s32.totalorder %s320, 0
        // Predicated region
        $region66: #{custom-call.11} parent=64 // pred_check
          %p322 = pneg %p321
        $region67: #{custom-call.11} parent=64 // pred_check_branch
          %324 = sbr.rel (%p322) target = $region69
        $region68: #{custom-call.11} parent=64 // pred_region
          %s325 = ssub.s32 %s320, 1
          %s326 = smul.u32 %s325, 128
          %s327 = sshra.s32 %s326, 4
          %s328 = scalar_lea.vmem [#allocation6], %s327
          %v329 = vld [vmem:[#allocation6] sm:$0xff]
          // While loop
          $region70: #{custom-call.11} parent=68 // loop_pre_header
            _
          $region71: #{custom-call.11} parent=68 // loop_header
            %s330 = sphi [#allocation6], %s352
            %s331 = sphi %s3, %s353
            %v332 = vphi %v329, %v354
            %s333 = ssub.s32 %s328, 64
            %p334 = scmp.gt.s32.totalorder %s330, %s333
          $region72: #{custom-call.11} parent=68 // loop_header_branch
            %336 = sbr.rel (%p334) target = $region76
          $region73: #{custom-call.11} parent=68 // loop_body
            %337 = vst [vmem:[%s331] sm:$0xff] %v332
            %v338 = vld [vmem:[%s330 + $0x8] sm:$0xff]
            %339 = vst [vmem:[%s331 + $0x8] sm:$0xff] %v338
            %v340 = vld [vmem:[%s330 + $0x10] sm:$0xff]
            %341 = vst [vmem:[%s331 + $0x10] sm:$0xff] %v340
            %v342 = vld [vmem:[%s330 + $0x18] sm:$0xff]
            %343 = vst [vmem:[%s331 + $0x18] sm:$0xff] %v342
            %v344 = vld [vmem:[%s330 + $0x20] sm:$0xff]
            %345 = vst [vmem:[%s331 + $0x20] sm:$0xff] %v344
            %v346 = vld [vmem:[%s330 + $0x28] sm:$0xff]
            %347 = vst [vmem:[%s331 + $0x28] sm:$0xff] %v346
            %v348 = vld [vmem:[%s330 + $0x30] sm:$0xff]
            %349 = vst [vmem:[%s331 + $0x30] sm:$0xff] %v348
            %v350 = vld [vmem:[%s330 + $0x38] sm:$0xff]
            %351 = vst [vmem:[%s331 + $0x38] sm:$0xff] %v350
          $region74: #{custom-call.11} parent=68 // loop_footer
            %s352 = scalar_lea.vmem %s330, 64
            %s353 = scalar_lea.vmem %s331, 64
            %v354 = vld [vmem:[%s330 + $0x40] sm:$0xff]
          $region75: #{custom-call.11} parent=68 // loop_footer_branch
            %355 = sbr.rel target = $region71
          $region76: #{custom-call.11} parent=68 // loop_exit
            _
          // While loop
          $region77: #{custom-call.11} parent=68 // loop_pre_header
            _
          $region78: #{custom-call.11} parent=68 // loop_header
            %s356 = sphi %s330, %s364
            %s357 = sphi %s331, %s365
            %v358 = vphi %v332, %v358
            %p359 = scmp.gt.s32.totalorder %s356, %s328
          $region79: #{custom-call.11} parent=68 // loop_header_branch
            %361 = sbr.rel (%p359) target = $region83
          $region80: #{custom-call.11} parent=68 // loop_body
            %v362 = vld [vmem:[%s356] sm:$0xff]
            %363 = vst [vmem:[%s357] sm:$0xff] %v362
          $region81: #{custom-call.11} parent=68 // loop_footer
            %s364 = scalar_lea.vmem %s356, 8
            %s365 = scalar_lea.vmem %s357, 8
          $region82: #{custom-call.11} parent=68 // loop_footer_branch
            %366 = sbr.rel target = $region78
          $region83: #{custom-call.11} parent=68 // loop_exit
            _
        $region69: #{custom-call.11} parent=64 // pred_fallthru
          _
        %s367 = sand.u32 1, 7
        %s368 = sshllo.u32 0, %s367
        %s369 = smul.u32 %s320, 128
        %s370 = sshra.s32 %s369, 4
        %s371 = scalar_lea.vmem %s3, %s370
        %s372 = smul.u32 %s320, 128
        %s373 = sshra.s32 %s372, 4
        %s374 = scalar_lea.vmem [#allocation6], %s373
        %v375 = vld [vmem:[%s374] sm:%s368]
        %376 = vst [vmem:[%s371] sm:%s368] %v375
      $region65: #{custom-call.11} parent=60 // pred_fallthru
        _
    $region61: #{custom-call.11} parent=1 // pred_fallthru
      _
    // Predicated region
    $region84: #{custom-call.11} parent=1 // pred_check
      _
    $region85: #{custom-call.11} parent=1 // pred_check_branch
      %378 = sbr.rel (0) target = $region87
    $region86: #{custom-call.11} parent=1 // pred_region
      %379 = dma.done [#allocation4], 16
    $region87: #{custom-call.11} parent=1 // pred_fallthru
      _
    // Predicated region
    $region88: #{custom-call.11} parent=1 // pred_check
      _
    $region89: #{custom-call.11} parent=1 // pred_check_branch
      %381 = sbr.rel (0) target = $region91
    $region90: #{custom-call.11} parent=1 // pred_region
      _
    $region91: #{custom-call.11} parent=1 // pred_fallthru
      _
    %382 = vsyncpa [#allocation4], 1

// kernel: custom-call.13
$region0: #{custom-call.13}
  %s0 = inlined_call_operand.vmem [shape: f32[1,8,8], index: 0, kind: input, shape index: {}]
  %s1 = inlined_call_operand.vmem [shape: f32[1,8,8], index: 1, kind: output, shape index: {}]
  $region1: #{custom-call.13} parent=0
    #allocation0 [shape = 'u8[4096]{0}', space=vmem, size = 0x1000, scoped, tag = 'operand span for operand 0']
    #allocation1 [shape = 'u8[4096]{0}', space=vmem, size = 0x1000, scoped, tag = 'operand span for operand 1']
    #allocation2 [shape = 'f32[8,8]{1,0}', space=vmem, size = 0x1000, scoped, tag = 'rescaled input a']
    // Predicated region
    $region2: #{custom-call.13} parent=1 // pred_check
      _
    $region3: #{custom-call.13} parent=1 // pred_check_branch
      %3 = sbr.rel (0) target = $region5
    $region4: #{custom-call.13} parent=1 // pred_region
      // Predicated region
      $region6: #{custom-call.13} parent=4 // pred_check
        _
      $region7: #{custom-call.13} parent=4 // pred_check_branch
        %5 = sbr.rel (0) target = $region9
      $region8: #{custom-call.13} parent=4 // pred_region
        // Predicated region
        $region21: #{custom-call.13} parent=8 // pred_check
          _
        $region22: #{custom-call.13} parent=8 // pred_check_branch
          %20 = sbr.rel (0) target = $region24
        $region23: #{custom-call.13} parent=8 // pred_region
          loop: start=0, step=1, limit=1
          $region25: #{custom-call.13} parent=23 // loop_pre_header
            _
          $region26: #{custom-call.13} parent=23 // loop_header
            %s22 = sphi 0, %s26
            %p23 = scmp.ge.s32.totalorder %s22, 1
            %s27 = sphi %s0, %s0
            %s28 = sphi [#allocation0], [#allocation0]
          $region27: #{custom-call.13} parent=23 // loop_header_branch
            %25 = sbr.rel (%p23) target = $region31
          $region28: #{custom-call.13} parent=23 // loop_body
            %v29 = vld [vmem:[%s27] sm:$0xff]
            %30 = vst [vmem:[%s28] sm:$0xff] %v29
          $region29: #{custom-call.13} parent=23 // loop_footer
            %s26 = sadd.s32 1, %s22
          $region30: #{custom-call.13} parent=23 // loop_footer_branch
            %21 = sbr.rel target = $region26
          $region31: #{custom-call.13} parent=23 // loop_exit
            _
        $region24: #{custom-call.13} parent=8 // pred_fallthru
          _
        // Predicated region
        $region32: #{custom-call.13} parent=8 // pred_check
          _
        $region33: #{custom-call.13} parent=8 // pred_check_branch
          %32 = sbr.rel target = $region35
        $region34: #{custom-call.13} parent=8 // pred_region
          _
        $region35: #{custom-call.13} parent=8 // pred_fallthru
          _
      $region9: #{custom-call.13} parent=4 // pred_fallthru
        _
      // Predicated region
      $region10: #{custom-call.13} parent=4 // pred_check
        _
      $region11: #{custom-call.13} parent=4 // pred_check_branch
        %7 = sbr.rel target = $region13
      $region12: #{custom-call.13} parent=4 // pred_region
        loop: start=0, step=1, limit=1
        $region14: #{custom-call.13} parent=12 // loop_pre_header
          _
        $region15: #{custom-call.13} parent=12 // loop_header
          %s10 = sphi 0, %s14
          %p11 = scmp.ge.s32.totalorder %s10, 1
          %s15 = sphi %s0, %s0
          %s16 = sphi [#allocation0], [#allocation0]
        $region16: #{custom-call.13} parent=12 // loop_header_branch
          %13 = sbr.rel (%p11) target = $region20
        $region17: #{custom-call.13} parent=12 // loop_body
          %v17 = vld [vmem:[%s15] sm:$0xff]
          %18 = vst [vmem:[%s16] sm:$0xff] %v17
        $region18: #{custom-call.13} parent=12 // loop_footer
          %s14 = sadd.s32 1, %s10
        $region19: #{custom-call.13} parent=12 // loop_footer_branch
          %9 = sbr.rel target = $region15
        $region20: #{custom-call.13} parent=12 // loop_exit
          _
      $region13: #{custom-call.13} parent=4 // pred_fallthru
        _
    $region5: #{custom-call.13} parent=1 // pred_fallthru
      _
    %33 = vnop
    %v34 = vlaneseq
    %v35 = vand.u32 %v34, 127
    %vm36 = vcmp.lt.s32.totalorder %v35, 8
    %v37 = vlaneseq
    %v38 = vshrl.u32 %v37, 7
    %vm40 = vcmp.eq.s32.totalorder %v38, %v35
    %v41 = vld [vmem:[#allocation0] sm:$0xff]
    %v42 = vsel %vm40, %v41, 0.0
    %43 = vadd.xlane.f32.xlu0 %v42
    %v44 = vpop.xlane.xlu0 %43
    %vm45 = vcmp.ge.s32.totalorder %v38, %v35
    %vm46 = vmand %vm45, %vm36
    %v47 = vsel %vm46, %v41, 0.0
    %v48 = vrcp.pop %v44
    %v49 = vmul.f32 %v47, %v48
    %50 = vst [vmem:[#allocation2] sm:$0xff] %v49
    %v51 = vlaneseq
    %v52 = vand.u32 %v51, 127
    %v53 = vlaneseq
    %v54 = vshrl.u32 %v53, 7
    %vm56 = vcmp.eq.s32.totalorder %v52, %v54
    %v57 = vlaneseq
    %v58 = vand.u32 %v57, 127
    %vm59 = vcmp.eq.s32.totalorder %v58, 0
    %v60 = vsel %vm59, 1.0, -1.0
    %v61 = vsel %vm56, %v60, 0.0
    %s62 = scalar_lea.vmem [#allocation2], 1
    %v63 = vld [vmem:[%s62] ss:$0 sm:$0xff]
    %v64 = vxor.u32 %v63, 2147483648
    %v65 = vlaneseq
    %v66 = vand.u32 %v65, 127
    %vm67 = vcmp.eq.s32.totalorder %v66, 1
    %v68 = vmul.f32 %v64, %v61
    %69 = vadd.xlane.f32.xlu0 %v68
    %v70 = vpop.xlane.xlu0 %69
    %v71 = vsel %vm67, %v70, %v61
    %s72 = scalar_lea.vmem [#allocation2], 2
    %v73 = vld [vmem:[%s72] ss:$0 sm:$0xff]
    %v74 = vxor.u32 %v73, 2147483648
    %v75 = vlaneseq
    %v76 = vand.u32 %v75, 127
    %vm77 = vcmp.eq.s32.totalorder %v76, 2
    %v78 = vmul.f32 %v74, %v71
    %79 = vadd.xlane.f32.xlu0 %v78
    %v80 = vpop.xlane.xlu0 %79
    %v81 = vsel %vm77, %v80, %v71
    %s82 = scalar_lea.vmem [#allocation2], 3
    %v83 = vld [vmem:[%s82] ss:$0 sm:$0xff]
    %v84 = vxor.u32 %v83, 2147483648
    %v85 = vlaneseq
    %v86 = vand.u32 %v85, 127
    %vm87 = vcmp.eq.s32.totalorder %v86, 3
    %v88 = vmul.f32 %v84, %v81
    %89 = vadd.xlane.f32.xlu0 %v88
    %v90 = vpop.xlane.xlu0 %89
    %v91 = vsel %vm87, %v90, %v81
    %s92 = scalar_lea.vmem [#allocation2], 4
    %v93 = vld [vmem:[%s92] ss:$0 sm:$0xff]
    %v94 = vxor.u32 %v93, 2147483648
    %v95 = vlaneseq
    %v96 = vand.u32 %v95, 127
    %vm97 = vcmp.eq.s32.totalorder %v96, 4
    %v98 = vmul.f32 %v94, %v91
    %99 = vadd.xlane.f32.xlu0 %v98
    %v100 = vpop.xlane.xlu0 %99
    %v101 = vsel %vm97, %v100, %v91
    %s102 = scalar_lea.vmem [#allocation2], 5
    %v103 = vld [vmem:[%s102] ss:$0 sm:$0xff]
    %v104 = vxor.u32 %v103, 2147483648
    %v105 = vlaneseq
    %v106 = vand.u32 %v105, 127
    %vm107 = vcmp.eq.s32.totalorder %v106, 5
    %v108 = vmul.f32 %v104, %v101
    %109 = vadd.xlane.f32.xlu0 %v108
    %v110 = vpop.xlane.xlu0 %109
    %v111 = vsel %vm107, %v110, %v101
    %s112 = scalar_lea.vmem [#allocation2], 6
    %v113 = vld [vmem:[%s112] ss:$0 sm:$0xff]
    %v114 = vxor.u32 %v113, 2147483648
    %v115 = vlaneseq
    %v116 = vand.u32 %v115, 127
    %vm117 = vcmp.eq.s32.totalorder %v116, 6
    %v118 = vmul.f32 %v114, %v111
    %119 = vadd.xlane.f32.xlu0 %v118
    %v120 = vpop.xlane.xlu0 %119
    %v121 = vsel %vm117, %v120, %v111
    %s122 = scalar_lea.vmem [#allocation2], 7
    %v123 = vld [vmem:[%s122] ss:$0 sm:$0xff]
    %v124 = vxor.u32 %v123, 2147483648
    %v125 = vlaneseq
    %v126 = vand.u32 %v125, 127
    %vm127 = vcmp.eq.s32.totalorder %v126, 7
    %v128 = vmul.f32 %v124, %v121
    %129 = vadd.xlane.f32.xlu0 %v128
    %v130 = vpop.xlane.xlu0 %129
    %v131 = vsel %vm127, %v130, %v121
    %v132 = vrcp.pop %v44
    %v133 = vmul.f32 %v131, %v132
    %vm134 = vweird.f32 %v44
    %v135 = vsel %vm134, %v131, %v133
    %136 = vst [vmem:[#allocation1] sm:$0xff] %v135
    // Predicated region
    $region36: #{custom-call.13} parent=1 // pred_check
      _
    $region37: #{custom-call.13} parent=1 // pred_check_branch
      %138 = sbr.rel (0) target = $region39
    $region38: #{custom-call.13} parent=1 // pred_region
      // Predicated region
      $region40: #{custom-call.13} parent=38 // pred_check
        _
      $region41: #{custom-call.13} parent=38 // pred_check_branch
        %140 = sbr.rel (0) target = $region43
      $region42: #{custom-call.13} parent=38 // pred_region
        // Predicated region
        $region55: #{custom-call.13} parent=42 // pred_check
          _
        $region56: #{custom-call.13} parent=42 // pred_check_branch
          %155 = sbr.rel (0) target = $region58
        $region57: #{custom-call.13} parent=42 // pred_region
          loop: start=0, step=1, limit=1
          $region59: #{custom-call.13} parent=57 // loop_pre_header
            _
          $region60: #{custom-call.13} parent=57 // loop_header
            %s157 = sphi 0, %s161
            %p158 = scmp.ge.s32.totalorder %s157, 1
            %s162 = sphi [#allocation1], [#allocation1]
            %s163 = sphi %s1, %s1
          $region61: #{custom-call.13} parent=57 // loop_header_branch
            %160 = sbr.rel (%p158) target = $region65
          $region62: #{custom-call.13} parent=57 // loop_body
            %v164 = vld [vmem:[%s162] sm:$0xff]
            %165 = vst [vmem:[%s163] sm:$0xff] %v164
          $region63: #{custom-call.13} parent=57 // loop_footer
            %s161 = sadd.s32 1, %s157
          $region64: #{custom-call.13} parent=57 // loop_footer_branch
            %156 = sbr.rel target = $region60
          $region65: #{custom-call.13} parent=57 // loop_exit
            _
        $region58: #{custom-call.13} parent=42 // pred_fallthru
          _
        // Predicated region
        $region66: #{custom-call.13} parent=42 // pred_check
          _
        $region67: #{custom-call.13} parent=42 // pred_check_branch
          %167 = sbr.rel target = $region69
        $region68: #{custom-call.13} parent=42 // pred_region
          _
        $region69: #{custom-call.13} parent=42 // pred_fallthru
          _
      $region43: #{custom-call.13} parent=38 // pred_fallthru
        _
      // Predicated region
      $region44: #{custom-call.13} parent=38 // pred_check
        _
      $region45: #{custom-call.13} parent=38 // pred_check_branch
        %142 = sbr.rel target = $region47
      $region46: #{custom-call.13} parent=38 // pred_region
        loop: start=0, step=1, limit=1
        $region48: #{custom-call.13} parent=46 // loop_pre_header
          _
        $region49: #{custom-call.13} parent=46 // loop_header
          %s145 = sphi 0, %s149
          %p146 = scmp.ge.s32.totalorder %s145, 1
          %s150 = sphi [#allocation1], [#allocation1]
          %s151 = sphi %s1, %s1
        $region50: #{custom-call.13} parent=46 // loop_header_branch
          %148 = sbr.rel (%p146) target = $region54
        $region51: #{custom-call.13} parent=46 // loop_body
          %v152 = vld [vmem:[%s150] sm:$0xff]
          %153 = vst [vmem:[%s151] sm:$0xff] %v152
        $region52: #{custom-call.13} parent=46 // loop_footer
          %s149 = sadd.s32 1, %s145
        $region53: #{custom-call.13} parent=46 // loop_footer_branch
          %144 = sbr.rel target = $region49
        $region54: #{custom-call.13} parent=46 // loop_exit
          _
      $region47: #{custom-call.13} parent=38 // pred_fallthru
        _
    $region39: #{custom-call.13} parent=1 // pred_fallthru
      _
    %168 = vnop

// kernel: custom-call.12
$region0: #{custom-call.12}
  %s0 = inlined_call_operand.vmem [shape: f32[1,8,8], index: 0, kind: input, shape index: {}]
  %s1 = inlined_call_operand.vmem [shape: f32[1,8,8], index: 1, kind: output, shape index: {}]
  $region1: #{custom-call.12} parent=0
    #allocation0 [shape = 'u8[4096]{0}', space=vmem, size = 0x1000, scoped, tag = 'operand span for operand 0']
    #allocation1 [shape = 'u8[4096]{0}', space=vmem, size = 0x1000, scoped, tag = 'operand span for operand 1']
    #allocation2 [shape = 'f32[8,8]{1,0}', space=vmem, size = 0x1000, scoped, tag = 'rescaled input a']
    // Predicated region
    $region2: #{custom-call.12} parent=1 // pred_check
      _
    $region3: #{custom-call.12} parent=1 // pred_check_branch
      %3 = sbr.rel (0) target = $region5
    $region4: #{custom-call.12} parent=1 // pred_region
      // Predicated region
      $region6: #{custom-call.12} parent=4 // pred_check
        _
      $region7: #{custom-call.12} parent=4 // pred_check_branch
        %5 = sbr.rel (0) target = $region9
      $region8: #{custom-call.12} parent=4 // pred_region
        // Predicated region
        $region21: #{custom-call.12} parent=8 // pred_check
          _
        $region22: #{custom-call.12} parent=8 // pred_check_branch
          %20 = sbr.rel (0) target = $region24
        $region23: #{custom-call.12} parent=8 // pred_region
          loop: start=0, step=1, limit=1
          $region25: #{custom-call.12} parent=23 // loop_pre_header
            _
          $region26: #{custom-call.12} parent=23 // loop_header
            %s22 = sphi 0, %s26
            %p23 = scmp.ge.s32.totalorder %s22, 1
            %s27 = sphi %s0, %s0
            %s28 = sphi [#allocation0], [#allocation0]
          $region27: #{custom-call.12} parent=23 // loop_header_branch
            %25 = sbr.rel (%p23) target = $region31
          $region28: #{custom-call.12} parent=23 // loop_body
            %v29 = vld [vmem:[%s27] sm:$0xff]
            %30 = vst [vmem:[%s28] sm:$0xff] %v29
          $region29: #{custom-call.12} parent=23 // loop_footer
            %s26 = sadd.s32 1, %s22
          $region30: #{custom-call.12} parent=23 // loop_footer_branch
            %21 = sbr.rel target = $region26
          $region31: #{custom-call.12} parent=23 // loop_exit
            _
        $region24: #{custom-call.12} parent=8 // pred_fallthru
          _
        // Predicated region
        $region32: #{custom-call.12} parent=8 // pred_check
          _
        $region33: #{custom-call.12} parent=8 // pred_check_branch
          %32 = sbr.rel target = $region35
        $region34: #{custom-call.12} parent=8 // pred_region
          _
        $region35: #{custom-call.12} parent=8 // pred_fallthru
          _
      $region9: #{custom-call.12} parent=4 // pred_fallthru
        _
      // Predicated region
      $region10: #{custom-call.12} parent=4 // pred_check
        _
      $region11: #{custom-call.12} parent=4 // pred_check_branch
        %7 = sbr.rel target = $region13
      $region12: #{custom-call.12} parent=4 // pred_region
        loop: start=0, step=1, limit=1
        $region14: #{custom-call.12} parent=12 // loop_pre_header
          _
        $region15: #{custom-call.12} parent=12 // loop_header
          %s10 = sphi 0, %s14
          %p11 = scmp.ge.s32.totalorder %s10, 1
          %s15 = sphi %s0, %s0
          %s16 = sphi [#allocation0], [#allocation0]
        $region16: #{custom-call.12} parent=12 // loop_header_branch
          %13 = sbr.rel (%p11) target = $region20
        $region17: #{custom-call.12} parent=12 // loop_body
          %v17 = vld [vmem:[%s15] sm:$0xff]
          %18 = vst [vmem:[%s16] sm:$0xff] %v17
        $region18: #{custom-call.12} parent=12 // loop_footer
          %s14 = sadd.s32 1, %s10
        $region19: #{custom-call.12} parent=12 // loop_footer_branch
          %9 = sbr.rel target = $region15
        $region20: #{custom-call.12} parent=12 // loop_exit
          _
      $region13: #{custom-call.12} parent=4 // pred_fallthru
        _
    $region5: #{custom-call.12} parent=1 // pred_fallthru
      _
    %33 = vnop
    %v34 = vlaneseq
    %v35 = vand.u32 %v34, 127
    %vm36 = vcmp.lt.s32.totalorder %v35, 8
    %v37 = vlaneseq
    %v38 = vshrl.u32 %v37, 7
    %vm40 = vcmp.eq.s32.totalorder %v38, %v35
    %v41 = vld [vmem:[#allocation0] sm:$0xff]
    %v42 = vsel %vm40, %v41, 0.0
    %43 = vadd.xlane.f32.xlu0 %v42
    %v44 = vpop.xlane.xlu0 %43
    %vm45 = vcmp.le.s32.totalorder %v38, %v35
    %vm46 = vmand %vm45, %vm36
    %v47 = vsel %vm46, %v41, 0.0
    %v48 = vrcp.pop %v44
    %v49 = vmul.f32 %v47, %v48
    %50 = vst [vmem:[#allocation2] sm:$0xff] %v49
    %v51 = vlaneseq
    %v52 = vand.u32 %v51, 127
    %v53 = vlaneseq
    %v54 = vshrl.u32 %v53, 7
    %vm56 = vcmp.eq.s32.totalorder %v52, %v54
    %v57 = vlaneseq
    %v58 = vand.u32 %v57, 127
    %vm59 = vcmp.eq.s32.totalorder %v58, 7
    %v60 = vsel %vm59, 1.0, -1.0
    %v61 = vsel %vm56, %v60, 0.0
    %s62 = scalar_lea.vmem [#allocation2], 6
    %v63 = vld [vmem:[%s62] ss:$0 sm:$0xff]
    %v64 = vxor.u32 %v63, 2147483648
    %v65 = vlaneseq
    %v66 = vand.u32 %v65, 127
    %vm67 = vcmp.eq.s32.totalorder %v66, 6
    %v68 = vmul.f32 %v64, %v61
    %69 = vadd.xlane.f32.xlu0 %v68
    %v70 = vpop.xlane.xlu0 %69
    %v71 = vsel %vm67, %v70, %v61
    %s72 = scalar_lea.vmem [#allocation2], 5
    %v73 = vld [vmem:[%s72] ss:$0 sm:$0xff]
    %v74 = vxor.u32 %v73, 2147483648
    %v75 = vlaneseq
    %v76 = vand.u32 %v75, 127
    %vm77 = vcmp.eq.s32.totalorder %v76, 5
    %v78 = vmul.f32 %v74, %v71
    %79 = vadd.xlane.f32.xlu0 %v78
    %v80 = vpop.xlane.xlu0 %79
    %v81 = vsel %vm77, %v80, %v71
    %s82 = scalar_lea.vmem [#allocation2], 4
    %v83 = vld [vmem:[%s82] ss:$0 sm:$0xff]
    %v84 = vxor.u32 %v83, 2147483648
    %v85 = vlaneseq
    %v86 = vand.u32 %v85, 127
    %vm87 = vcmp.eq.s32.totalorder %v86, 4
    %v88 = vmul.f32 %v84, %v81
    %89 = vadd.xlane.f32.xlu0 %v88
    %v90 = vpop.xlane.xlu0 %89
    %v91 = vsel %vm87, %v90, %v81
    %s92 = scalar_lea.vmem [#allocation2], 3
    %v93 = vld [vmem:[%s92] ss:$0 sm:$0xff]
    %v94 = vxor.u32 %v93, 2147483648
    %v95 = vlaneseq
    %v96 = vand.u32 %v95, 127
    %vm97 = vcmp.eq.s32.totalorder %v96, 3
    %v98 = vmul.f32 %v94, %v91
    %99 = vadd.xlane.f32.xlu0 %v98
    %v100 = vpop.xlane.xlu0 %99
    %v101 = vsel %vm97, %v100, %v91
    %s102 = scalar_lea.vmem [#allocation2], 2
    %v103 = vld [vmem:[%s102] ss:$0 sm:$0xff]
    %v104 = vxor.u32 %v103, 2147483648
    %v105 = vlaneseq
    %v106 = vand.u32 %v105, 127
    %vm107 = vcmp.eq.s32.totalorder %v106, 2
    %v108 = vmul.f32 %v104, %v101
    %109 = vadd.xlane.f32.xlu0 %v108
    %v110 = vpop.xlane.xlu0 %109
    %v111 = vsel %vm107, %v110, %v101
    %s112 = scalar_lea.vmem [#allocation2], 1
    %v113 = vld [vmem:[%s112] ss:$0 sm:$0xff]
    %v114 = vxor.u32 %v113, 2147483648
    %v115 = vlaneseq
    %v116 = vand.u32 %v115, 127
    %vm117 = vcmp.eq.s32.totalorder %v116, 1
    %v118 = vmul.f32 %v114, %v111
    %119 = vadd.xlane.f32.xlu0 %v118
    %v120 = vpop.xlane.xlu0 %119
    %v121 = vsel %vm117, %v120, %v111
    %v122 = vld [vmem:[#allocation2] ss:$0 sm:$0xff]
    %v123 = vxor.u32 %v122, 2147483648
    %v124 = vlaneseq
    %v125 = vand.u32 %v124, 127
    %vm126 = vcmp.eq.s32.totalorder %v125, 0
    %v127 = vmul.f32 %v123, %v121
    %128 = vadd.xlane.f32.xlu0 %v127
    %v129 = vpop.xlane.xlu0 %128
    %v130 = vsel %vm126, %v129, %v121
    %v131 = vrcp.pop %v44
    %v132 = vmul.f32 %v130, %v131
    %vm133 = vweird.f32 %v44
    %v134 = vsel %vm133, %v130, %v132
    %135 = vst [vmem:[#allocation1] sm:$0xff] %v134
    // Predicated region
    $region36: #{custom-call.12} parent=1 // pred_check
      _
    $region37: #{custom-call.12} parent=1 // pred_check_branch
      %137 = sbr.rel (0) target = $region39
    $region38: #{custom-call.12} parent=1 // pred_region
      // Predicated region
      $region40: #{custom-call.12} parent=38 // pred_check
        _
      $region41: #{custom-call.12} parent=38 // pred_check_branch
        %139 = sbr.rel (0) target = $region43
      $region42: #{custom-call.12} parent=38 // pred_region
        // Predicated region
        $region55: #{custom-call.12} parent=42 // pred_check
          _
        $region56: #{custom-call.12} parent=42 // pred_check_branch
          %154 = sbr.rel (0) target = $region58
        $region57: #{custom-call.12} parent=42 // pred_region
          loop: start=0, step=1, limit=1
          $region59: #{custom-call.12} parent=57 // loop_pre_header
            _
          $region60: #{custom-call.12} parent=57 // loop_header
            %s156 = sphi 0, %s160
            %p157 = scmp.ge.s32.totalorder %s156, 1
            %s161 = sphi [#allocation1], [#allocation1]
            %s162 = sphi %s1, %s1
          $region61: #{custom-call.12} parent=57 // loop_header_branch
            %159 = sbr.rel (%p157) target = $region65
          $region62: #{custom-call.12} parent=57 // loop_body
            %v163 = vld [vmem:[%s161] sm:$0xff]
            %164 = vst [vmem:[%s162] sm:$0xff] %v163
          $region63: #{custom-call.12} parent=57 // loop_footer
            %s160 = sadd.s32 1, %s156
          $region64: #{custom-call.12} parent=57 // loop_footer_branch
            %155 = sbr.rel target = $region60
          $region65: #{custom-call.12} parent=57 // loop_exit
            _
        $region58: #{custom-call.12} parent=42 // pred_fallthru
          _
        // Predicated region
        $region66: #{custom-call.12} parent=42 // pred_check
          _
        $region67: #{custom-call.12} parent=42 // pred_check_branch
          %166 = sbr.rel target = $region69
        $region68: #{custom-call.12} parent=42 // pred_region
          _
        $region69: #{custom-call.12} parent=42 // pred_fallthru
          _
      $region43: #{custom-call.12} parent=38 // pred_fallthru
        _
      // Predicated region
      $region44: #{custom-call.12} parent=38 // pred_check
        _
      $region45: #{custom-call.12} parent=38 // pred_check_branch
        %141 = sbr.rel target = $region47
      $region46: #{custom-call.12} parent=38 // pred_region
        loop: start=0, step=1, limit=1
        $region48: #{custom-call.12} parent=46 // loop_pre_header
          _
        $region49: #{custom-call.12} parent=46 // loop_header
          %s144 = sphi 0, %s148
          %p145 = scmp.ge.s32.totalorder %s144, 1
          %s149 = sphi [#allocation1], [#allocation1]
          %s150 = sphi %s1, %s1
        $region50: #{custom-call.12} parent=46 // loop_header_branch
          %147 = sbr.rel (%p145) target = $region54
        $region51: #{custom-call.12} parent=46 // loop_body
          %v151 = vld [vmem:[%s149] sm:$0xff]
          %152 = vst [vmem:[%s150] sm:$0xff] %v151
        $region52: #{custom-call.12} parent=46 // loop_footer
          %s148 = sadd.s32 1, %s144
        $region53: #{custom-call.12} parent=46 // loop_footer_branch
          %143 = sbr.rel target = $region49
        $region54: #{custom-call.12} parent=46 // loop_exit
          _
      $region47: #{custom-call.12} parent=38 // pred_fallthru
        _
    $region39: #{custom-call.12} parent=1 // pred_fallthru
      _
    %167 = vnop

// kernel: krasulina_step.1
$region0: #{krasulina_step.1}
  #allocation0 [shape = 'u32[]', space=smem, size = 0x4, offset = 0x4, fixed_abs, tag = 'smem constant byte address 0x4 - core index']
  #allocation1 [shape = 'u32[144,128]{1,0:T(1,128)}', space=vmem, size = 0x12000, scoped, tag = 'internal scratch']
  #allocation2 [shape = 'f32[8,32]{1,0:T(8,128)}', space=vmem, size = 0x1000, scoped, tag = 'scratch operand']
  %s0 = inlined_call_operand.vmem [shape: f32[64,32], index: 0, kind: input, shape index: {}]
  %s1 = inlined_call_operand.vmem [shape: f32[32,8], index: 1, kind: input, shape index: {}]
  %s2 = inlined_call_operand.vmem [shape: f32[8,32], index: 2, kind: input, shape index: {}]
  %s3 = inlined_call_operand.vmem [shape: f32[2,8,32], index: 3, kind: output, shape index: {}]
  %s4 = sld [smem:[#allocation0]]
  $region53: #{krasulina_step.1} parent=0
    _
  %s6 = ssub.s32 1, %s4
  %s7 = scalar_select 0, %s6, %s4
  loop: start=0, step=1, limit=6
  $region2: #{krasulina_step.1} parent=0 // loop_pre_header
    _
  $region3: #{krasulina_step.1} parent=0 // loop_header
    %s9 = sphi 0, %s13
    %p10 = scmp.ge.s32.totalorder %s9, 6
    %s16 = sphi 0, %s28
    %s17 = sphi 0, %s24
    %s18 = sphi 0, %s16
    %s19 = sphi 0, %s17
    %s20 = sphi 0, %s18
    %s21 = sphi 0, %s19
    %s35 = sphi 0, %s37
    %s38 = sphi 0, %s35
    %s39 = sphi 0, %s38
    %s55 = sphi 0, %s39
    %s59 = sphi 0, %s59
    %s61 = sphi 0, %s59
    %s62 = sphi 0, %s61
    %s76 = sphi 0, %s62
    %s80 = sphi 0, %s80
    %s82 = sphi 0, %s80
    %s83 = sphi 0, %s82
    %s97 = sphi 0, %s83
    %s103 = sphi 0, %s105
    %s106 = sphi 0, %s103
    %s107 = sphi 0, %s106
    %s123 = sphi 0, %s107
  $region4: #{krasulina_step.1} parent=0 // loop_header_branch
    %12 = sbr.rel (%p10) target = $region8
  $region5: #{krasulina_step.1} parent=0 // loop_body
    %s14 = ssub.s32 %s9, 1
    %s15 = ssub.s32 %s9, 2
    %s22 = sadd.s32 1, %s17
    %p23 = scmp.ge.s32.totalorder %s22, 2
    %s24 = scalar_select %p23, 0, %s22
    %s25 = sadd.s32 1, %s16
    %s26 = scalar_select %p23, %s25, %s16
    %p27 = scmp.ge.s32.totalorder %s26, 2
    %s28 = scalar_select %p27, 0, %s26
    %s29 = smul.u32 %s16, 2
    %s30 = sadd.s32 %s29, %s17
    %s31 = smul.u32 %s28, 2
    %s32 = sadd.s32 %s31, %s24
    %s33 = ssub.s32 %s30, %s32
    %p34 = scmp.eq.s32.totalorder %s33, 0
    %s36 = sadd.s32 %s35, 1
    %s37 = scalar_select %p34, %s35, %s36
    %p40 = pneg %p34
    %p41 = scmp.eq.s32.totalorder %s9, 3
    %p42 = por %p40, %p41
    %p43 = scmp.ne.s32.totalorder %s35, %s38
    %p44 = scmp.eq.s32.totalorder %s9, 0
    %p45 = por %p43, %p44
    %p46 = scmp.ne.s32.totalorder %s35, %s38
    %p47 = scmp.eq.s32.totalorder %s14, 3
    %p48 = por %p46, %p47
    %p49 = scmp.ne.s32.totalorder %s38, %s39
    %p50 = scmp.eq.s32.totalorder %s14, 0
    %p51 = por %p49, %p50
    %p52 = scmp.ne.s32.totalorder %s38, %s39
    %p53 = scmp.eq.s32.totalorder %s15, 3
    %p54 = por %p52, %p53
    %p56 = scmp.ne.s32.totalorder %s39, %s55
    %p57 = scmp.eq.s32.totalorder %s15, 0
    %p58 = por %p56, %p57
    %s60 = sadd.s32 %s59, 1
    %p63 = scmp.eq.s32.totalorder %s9, 3
    %p64 = scmp.ne.s32.totalorder %s59, %s61
    %p65 = scmp.eq.s32.totalorder %s9, 0
    %p66 = por %p64, %p65
    %p67 = scmp.ne.s32.totalorder %s59, %s61
    %p68 = scmp.eq.s32.totalorder %s14, 3
    %p69 = por %p67, %p68
    %p70 = scmp.ne.s32.totalorder %s61, %s62
    %p71 = scmp.eq.s32.totalorder %s14, 0
    %p72 = por %p70, %p71
    %p73 = scmp.ne.s32.totalorder %s61, %s62
    %p74 = scmp.eq.s32.totalorder %s15, 3
    %p75 = por %p73, %p74
    %p77 = scmp.ne.s32.totalorder %s62, %s76
    %p78 = scmp.eq.s32.totalorder %s15, 0
    %p79 = por %p77, %p78
    %s81 = sadd.s32 %s80, 1
    %p84 = scmp.eq.s32.totalorder %s9, 3
    %p85 = scmp.ne.s32.totalorder %s80, %s82
    %p86 = scmp.eq.s32.totalorder %s9, 0
    %p87 = por %p85, %p86
    %p88 = scmp.ne.s32.totalorder %s80, %s82
    %p89 = scmp.eq.s32.totalorder %s14, 3
    %p90 = por %p88, %p89
    %p91 = scmp.ne.s32.totalorder %s82, %s83
    %p92 = scmp.eq.s32.totalorder %s14, 0
    %p93 = por %p91, %p92
    %p94 = scmp.ne.s32.totalorder %s82, %s83
    %p95 = scmp.eq.s32.totalorder %s15, 3
    %p96 = por %p94, %p95
    %p98 = scmp.ne.s32.totalorder %s83, %s97
    %p99 = scmp.eq.s32.totalorder %s15, 0
    %p100 = por %p98, %p99
    %s101 = ssub.s32 %s16, %s28
    %p102 = scmp.eq.s32.totalorder %s101, 0
    %s104 = sadd.s32 %s103, 1
    %s105 = scalar_select %p102, %s103, %s104
    %p108 = pneg %p102
    %p109 = scmp.eq.s32.totalorder %s9, 3
    %p110 = por %p108, %p109
    %p111 = scmp.ne.s32.totalorder %s103, %s106
    %p112 = scmp.eq.s32.totalorder %s9, 0
    %p113 = por %p111, %p112
    %p114 = scmp.ne.s32.totalorder %s103, %s106
    %p115 = scmp.eq.s32.totalorder %s14, 3
    %p116 = por %p114, %p115
    %p117 = scmp.ne.s32.totalorder %s106, %s107
    %p118 = scmp.eq.s32.totalorder %s14, 0
    %p119 = por %p117, %p118
    %p120 = scmp.ne.s32.totalorder %s106, %s107
    %p121 = scmp.eq.s32.totalorder %s15, 3
    %p122 = por %p120, %p121
    %p124 = scmp.ne.s32.totalorder %s107, %s123
    %p125 = scmp.eq.s32.totalorder %s15, 0
    %p126 = por %p124, %p125
    %p127 = scmp.le.s32.totalorder 1, %s9
    %p128 = scmp.lt.s32.totalorder %s9, 5
    %p129 = pnand %p127, %p128
    %p130 = pneg %p129
    // Predicated region
    $region9: #{krasulina_step.1} parent=5 // pred_check
      _
    $region10: #{krasulina_step.1} parent=5 // pred_check_branch
      %132 = sbr.rel (%p129) target = $region12
    $region11: #{krasulina_step.1} parent=5 // pred_region
      %s133 = ssub.s32 %s9, 1
      // Predicated region
      $region13: #{krasulina_step.1} parent=11 // pred_check
        %p134 = pneg %p72
      $region14: #{krasulina_step.1} parent=11 // pred_check_branch
        %136 = sbr.rel (%p134) target = $region16
      $region15: #{krasulina_step.1} parent=11 // pred_region
        _
      $region16: #{krasulina_step.1} parent=11 // pred_fallthru
        _
      // Predicated region
      $region17: #{krasulina_step.1} parent=11 // pred_check
        %p137 = pneg %p93
      $region18: #{krasulina_step.1} parent=11 // pred_check_branch
        %139 = sbr.rel (%p137) target = $region20
      $region19: #{krasulina_step.1} parent=11 // pred_region
        _
      $region20: #{krasulina_step.1} parent=11 // pred_fallthru
        _
    $region12: #{krasulina_step.1} parent=5 // pred_fallthru
      _
    %p140 = scmp.lt.s32.totalorder %s9, 4
    // Predicated region
    $region21: #{krasulina_step.1} parent=5 // pred_check
      %p141 = pneg %p140
    $region22: #{krasulina_step.1} parent=5 // pred_check_branch
      %143 = sbr.rel (%p141) target = $region24
    $region23: #{krasulina_step.1} parent=5 // pred_region
      // Predicated region
      $region25: #{krasulina_step.1} parent=23 // pred_check
        %p144 = pneg %p45
      $region26: #{krasulina_step.1} parent=23 // pred_check_branch
        %146 = sbr.rel (%p144) target = $region28
      $region27: #{krasulina_step.1} parent=23 // pred_region
        %s147 = smul.u32 %s16, 2
        %s148 = sadd.s32 %s147, %s17
        %s149 = smul.u32 2, %s148
        %p150 = scmp.lt.s32.totalorder %s149, 7
        %s151 = scalar_select %p150, %s149, 7
        %s152 = smul.addr %s151, 8
        %s153 = scalar_lea.vmem %s0, %s152
        %s154 = smul.u32 %s16, 2
        %s155 = sadd.s32 %s154, %s17
        %s156 = smul.u32 2, %s155
      $region28: #{krasulina_step.1} parent=23 // pred_fallthru
        _
    $region24: #{krasulina_step.1} parent=5 // pred_fallthru
      _
    %p157 = scmp.le.s32.totalorder 1, %s9
    %p158 = scmp.lt.s32.totalorder %s9, 5
    %p159 = pnand %p157, %p158
    %p160 = pneg %p159
    // Predicated region
    $region29: #{krasulina_step.1} parent=5 // pred_check
      _
    $region30: #{krasulina_step.1} parent=5 // pred_check_branch
      %162 = sbr.rel (%p159) target = $region32
    $region31: #{krasulina_step.1} parent=5 // pred_region
      %s163 = ssub.s32 %s9, 1
      %s164 = smul.u32 %s18, 2
      %s165 = sadd.s32 %s164, %s19
      %s166 = smul.u32 2, %s165
      %p167 = scmp.lt.s32.totalorder %s166, 7
      %s168 = scalar_select %p167, %s166, 7
      %s169 = smul.addr %s168, 8
      %s170 = scalar_lea.vmem %s0, %s169
      %p171 = pneg %p51
      %p172 = pneg %p48
      %p173 = pneg %p72
      %p174 = pneg %p69
      %p175 = pneg %p93
      %p176 = pneg %p90
      %p177 = pneg %p119
      %p178 = pneg %p116
      %p179 = scmp.lt.s32.totalorder %s18, 1
      %s180 = scalar_select %p179, %s18, 1
      %s181 = smul.addr %s180, 8
      %s182 = scalar_lea.vmem %s3, %s181
      %s183 = smul.u32 %s18, 2
      %s184 = sadd.s32 %s183, %s19
      %s185 = smul.u32 2, %s184
      %p186 = scmp.lt.s32.totalorder %s185, 7
      %s187 = scalar_select %p186, %s185, 7
      %s188 = smul.addr %s187, 8
      %s189 = scalar_lea.vmem %s0, %s188
      %s190 = smul.u32 %s18, 2
      %s191 = sadd.s32 %s190, %s19
      %s192 = smul.u32 2, %s191
      %p193 = scmp.lt.s32.totalorder %s18, 1
      %s194 = scalar_select %p193, %s18, 1
      %s195 = smul.addr %s194, 8
      %s196 = scalar_lea.vmem %s3, %s195
      %p197 = scmp.eq.s32.totalorder %s19, 0
      // Predicated region
      $region33: #{krasulina_step.1} parent=31 // pred_check
        %p198 = pneg %p197
      $region34: #{krasulina_step.1} parent=31 // pred_check_branch
        %200 = sbr.rel (%p198) target = $region36
      $region35: #{krasulina_step.1} parent=31 // pred_region
        %vm201 = vcmask 261120
        %202 = vst.msk [vmem:[#allocation2] sm:$0xff] %vm201, 0.0
      $region36: #{krasulina_step.1} parent=31 // pred_fallthru
        _
      %v203 = vld [vmem:[%s189] sm:$0xff]
      %v204 = vld [vmem:[%s189 + $0x8] sm:$0xff]
      %v205 = vld [vmem:[%s1] sm:$0xff]
      %v206 = vld [vmem:[%s1 + $0x8] sm:$0xff]
      %v207 = vld [vmem:[%s1 + $0x10] sm:$0xff]
      %v208 = vld [vmem:[%s1 + $0x18] sm:$0xff]
      %vm209 = vcmask 261120
      %v211 = vsel %vm209, %v203, 0
      %v214 = vsel %vm209, %v204, 0
      %216 = vmatprep.subr.mxu0 0.0
      %217 = vmatpush1.msra.mxu0 %v205
      %218 = vmatprep.subr.mxu0 0.0
      %219 = vmatpush1.msra.mxu0 %v206
      %220 = vmatprep.subr.mxu0 0.0
      %221 = vmatpush1.msra.mxu0 %v207
      %222 = vmatprep.subr.mxu0 0.0
      %223 = vmatpush1.msra.mxu0 %v208
      %224 = vmatprep.subr.mxu0 0.0
      %225 = vmatpush1.msra.mxu0 0.0
      %226 = vmatprep.subr.mxu0 0.0
      %227 = vmatpush1.msra.mxu0 0.0
      %228 = vmatprep.subr.mxu0 0.0
      %229 = vmatpush1.msra.mxu0 0.0
      %230 = vmatprep.subr.mxu0 0.0
      %231 = vmatpush1.msra.mxu0 0.0
      %232 = vmatprep.subr.mxu0 0.0
      %233 = vmatpush1.msra.mxu0 0.0
      %234 = vmatprep.subr.mxu0 0.0
      %235 = vmatpush1.msra.mxu0 0.0
      %236 = vmatprep.subr.mxu0 0.0
      %237 = vmatpush1.msra.mxu0 0.0
      %238 = vmatprep.subr.mxu0 0.0
      %239 = vmatpush1.msra.mxu0 0.0
      %240 = vmatprep.subr.mxu0 0.0
      %241 = vmatpush1.msra.mxu0 0.0
      %242 = vmatprep.subr.mxu0 0.0
      %243 = vmatpush1.msra.mxu0 0.0
      %244 = vmatprep.subr.mxu0 0.0
      %245 = vmatpush1.msra.mxu0 0.0
      %246 = vmatprep.subr.mxu0 0.0
      %247 = vmatpush1.msra.mxu0 0.0
      %248 = vmatprep.subr.mxu0 0.0
      %249 = vmatpush1.msra.mxu0 0.0
      %250 = vmatprep.subr.mxu0 0.0
      %251 = vmatpush1.msra.mxu0 0.0
      %252 = vmatprep.subr.mxu0 0.0
      %253 = vmatpush1.msra.mxu0 0.0
      %254 = vmatprep.subr.mxu0 0.0
      %255 = vmatpush1.msra.mxu0 0.0
      %256 = vmatprep.subr.mxu0 0.0
      %257 = vmatpush1.msra.mxu0 0.0
      %258 = vmatprep.subr.mxu0 0.0
      %259 = vmatpush1.msra.mxu0 0.0
      %260 = vmatprep.subr.mxu0 0.0
      %261 = vmatpush1.msra.mxu0 0.0
      %262 = vmatprep.subr.mxu0 0.0
      %263 = vmatpush1.msra.mxu0 0.0
      %264 = vmatprep.subr.mxu0 0.0
      %265 = vmatpush1.msra.mxu0 0.0
      %266 = vmatprep.subr.mxu0 0.0
      %267 = vmatpush1.msra.mxu0 0.0
      %268 = vmatprep.subr.mxu0 0.0
      %269 = vmatpush1.msra.mxu0 0.0
      %270 = vmatprep.subr.mxu0 0.0
      %271 = vmatpush1.msra.mxu0 0.0
      %272 = vmatprep.subr.mxu0 0.0
      %273 = vmatpush1.msra.mxu0 0.0
      %274 = vmatprep.subr.mxu0 0.0
      %275 = vmatpush1.msra.mxu0 0.0
      %276 = vmatprep.subr.mxu0 0.0
      %277 = vmatpush1.msra.mxu0 0.0
      %278 = vmatprep.subr.mxu0 0.0
      %279 = vmatpush1.msra.mxu0 0.0
      %280 = vmatprep.mubr.f32.mxu0 0.0
      %281 = vmatmul.mubr.f32.gmra.mrb[0].mxu0 %v211
      %v282 = vpop.f32.mrb[0].mxu0
      %v283 = vadd.f32 0.0, %v282
      %v284 = vpop.f32.mrb[0].mxu0
      %285 = vmatprep.mubr.f32.mxu0 0.0
      %286 = vmatmul.mubr.f32.gmra.mrb[0].mxu0 %v214
      %v287 = vpop.f32.mrb[0].mxu0
      %v288 = vadd.f32 0.0, %v287
      %v289 = vpop.f32.mrb[0].mxu0
      %290 = vdwg.mxu0
      %v291 = vld [vmem:[%s2] sm:$0xff]
      %vm292 = vcmask 64512
      %v294 = vsel %vm292, %v283, 0
      %v297 = vsel %vm292, %v288, 0
      %299 = vmatprep.subr.mxu0 0.0
      %300 = vmatpush1.msra.mxu0 %v291
      %301 = vmatprep.subr.mxu0 0.0
      %302 = vmatpush1.msra.mxu0 0.0
      %303 = vmatprep.subr.mxu0 0.0
      %304 = vmatpush1.msra.mxu0 0.0
      %305 = vmatprep.subr.mxu0 0.0
      %306 = vmatpush1.msra.mxu0 0.0
      %307 = vmatprep.subr.mxu0 0.0
      %308 = vmatpush1.msra.mxu0 0.0
      %309 = vmatprep.subr.mxu0 0.0
      %310 = vmatpush1.msra.mxu0 0.0
      %311 = vmatprep.subr.mxu0 0.0
      %312 = vmatpush1.msra.mxu0 0.0
      %313 = vmatprep.subr.mxu0 0.0
      %314 = vmatpush1.msra.mxu0 0.0
      %315 = vmatprep.subr.mxu0 0.0
      %316 = vmatpush1.msra.mxu0 0.0
      %317 = vmatprep.subr.mxu0 0.0
      %318 = vmatpush1.msra.mxu0 0.0
      %319 = vmatprep.subr.mxu0 0.0
      %320 = vmatpush1.msra.mxu0 0.0
      %321 = vmatprep.subr.mxu0 0.0
      %322 = vmatpush1.msra.mxu0 0.0
      %323 = vmatprep.subr.mxu0 0.0
      %324 = vmatpush1.msra.mxu0 0.0
      %325 = vmatprep.subr.mxu0 0.0
      %326 = vmatpush1.msra.mxu0 0.0
      %327 = vmatprep.subr.mxu0 0.0
      %328 = vmatpush1.msra.mxu0 0.0
      %329 = vmatprep.subr.mxu0 0.0
      %330 = vmatpush1.msra.mxu0 0.0
      %331 = vmatprep.subr.mxu0 0.0
      %332 = vmatpush1.msra.mxu0 0.0
      %333 = vmatprep.subr.mxu0 0.0
      %334 = vmatpush1.msra.mxu0 0.0
      %335 = vmatprep.subr.mxu0 0.0
      %336 = vmatpush1.msra.mxu0 0.0
      %337 = vmatprep.subr.mxu0 0.0
      %338 = vmatpush1.msra.mxu0 0.0
      %339 = vmatprep.subr.mxu0 0.0
      %340 = vmatpush1.msra.mxu0 0.0
      %341 = vmatprep.subr.mxu0 0.0
      %342 = vmatpush1.msra.mxu0 0.0
      %343 = vmatprep.subr.mxu0 0.0
      %344 = vmatpush1.msra.mxu0 0.0
      %345 = vmatprep.subr.mxu0 0.0
      %346 = vmatpush1.msra.mxu0 0.0
      %347 = vmatprep.subr.mxu0 0.0
      %348 = vmatpush1.msra.mxu0 0.0
      %349 = vmatprep.subr.mxu0 0.0
      %350 = vmatpush1.msra.mxu0 0.0
      %351 = vmatprep.subr.mxu0 0.0
      %352 = vmatpush1.msra.mxu0 0.0
      %353 = vmatprep.subr.mxu0 0.0
      %354 = vmatpush1.msra.mxu0 0.0
      %355 = vmatprep.subr.mxu0 0.0
      %356 = vmatpush1.msra.mxu0 0.0
      %357 = vmatprep.subr.mxu0 0.0
      %358 = vmatpush1.msra.mxu0 0.0
      %359 = vmatprep.subr.mxu0 0.0
      %360 = vmatpush1.msra.mxu0 0.0
      %361 = vmatprep.subr.mxu0 0.0
      %362 = vmatpush1.msra.mxu0 0.0
      %363 = vmatprep.mubr.f32.mxu0 0.0
      %364 = vmatmul.mubr.f32.gmra.mrb[0].mxu0 %v294
      %v365 = vpop.f32.mrb[0].mxu0
      %v366 = vadd.f32 0.0, %v365
      %v367 = vpop.f32.mrb[0].mxu0
      %368 = vmatprep.mubr.f32.mxu0 0.0
      %369 = vmatmul.mubr.f32.gmra.mrb[0].mxu0 %v297
      %v370 = vpop.f32.mrb[0].mxu0
      %v371 = vadd.f32 0.0, %v370
      %v372 = vpop.f32.mrb[0].mxu0
      %373 = vdwg.mxu0
      %v374 = vsub.f32 %v203, %v366
      %v375 = vsub.f32 %v204, %v371
      %v376 = vmul.f32 %v283, %v283
      %v377 = vmul.f32 %v288, %v288
      %v378 = vsel %vm292, %v376, 0.0
      %379 = vadd.xlane.f32.xlu0 %v378
      %v380 = vpop.xlane.xlu0 %379
      %v381 = vsel %vm292, %v377, 0.0
      %382 = vadd.xlane.f32.xlu0 %v381
      %v383 = vpop.xlane.xlu0 %382
      %v384 = vrsqrt.pop %v380
      %v385 = vmul.f32 %v380, %v384
      %vm386 = vcmp.eq.f32.partialorder %v380, inf
      %v387 = vsel %vm386, %v380, %v385
      %vm388 = vcmp.eq.f32.partialorder %v380, 0.0
      %v389 = vand.u32 %v380, 2147483648
      %v390 = vsel %vm388, %v389, %v387
      %v391 = vrsqrt.pop %v383
      %v392 = vmul.f32 %v383, %v391
      %vm393 = vcmp.eq.f32.partialorder %v383, inf
      %v394 = vsel %vm393, %v383, %v392
      %vm395 = vcmp.eq.f32.partialorder %v383, 0.0
      %v396 = vand.u32 %v383, 2147483648
      %v397 = vsel %vm395, %v396, %v394
      %v398 = vmul.f32 %v390, 10.0
      %v399 = vmul.f32 %v397, 10.0
      %v400 = vadd.f32 %v398, 1.0
      %v401 = vadd.f32 %v399, 1.0
      %v402 = vrcp.pop %v400
      %v403 = vmul.f32 10.0, %v402
      %v404 = vrcp.pop %v401
      %v405 = vmul.f32 10.0, %v404
      %v406 = vmul.f32 %v403, %v374
      %v407 = vmul.f32 %v405, %v375
      %v408 = vld [vmem:[#allocation2] sm:$0xff]
      %409 = vxpose.xlu0.b32.start [1/16] %v283, 128
      %410 = vxpose.xlu0.b32.cont [2/16] %v288, 128
      %411 = vxpose.xlu0.b32.cont [3/16] 0.0, 128
      %412 = vxpose.xlu0.b32.cont [4/16] 0.0, 128
      %413 = vxpose.xlu0.b32.cont [5/16] 0.0, 128
      %414 = vxpose.xlu0.b32.cont [6/16] 0.0, 128
      %415 = vxpose.xlu0.b32.cont [7/16] 0.0, 128
      %416 = vxpose.xlu0.b32.cont [8/16] 0.0, 128
      %417 = vxpose.xlu0.b32.cont [9/16] 0.0, 128
      %418 = vxpose.xlu0.b32.cont [10/16] 0.0, 128
      %419 = vxpose.xlu0.b32.cont [11/16] 0.0, 128
      %420 = vxpose.xlu0.b32.cont [12/16] 0.0, 128
      %421 = vxpose.xlu0.b32.cont [13/16] 0.0, 128
      %422 = vxpose.xlu0.b32.cont [14/16] 0.0, 128
      %423 = vxpose.xlu0.b32.cont [15/16] 0.0, 128
      %424 = vxpose.xlu0.b32.end [16/16] 0.0, 128
      %v425 = vpop.trf.xlu0
      %v426 = vpop.trf.xlu0
      %v427 = vpop.trf.xlu0
      %v428 = vpop.trf.xlu0
      %v429 = vpop.trf.xlu0
      %v430 = vpop.trf.xlu0
      %v431 = vpop.trf.xlu0
      %v432 = vpop.trf.xlu0
      %v433 = vpop.trf.xlu0
      %v434 = vpop.trf.xlu0
      %v435 = vpop.trf.xlu0
      %v436 = vpop.trf.xlu0
      %v437 = vpop.trf.xlu0
      %v438 = vpop.trf.xlu0
      %v439 = vpop.trf.xlu0
      %v440 = vpop.trf.xlu0
      %vm441 = vcmask 130048
      %v443 = vsel %vm441, %v425, 0
      %445 = vmatprep.subr.mxu0 0.0
      %446 = vmatpush1.msra.mxu0 %v406
      %447 = vmatprep.subr.mxu0 0.0
      %448 = vmatpush1.msra.mxu0 %v407
      %449 = vmatprep.subr.mxu0 0.0
      %450 = vmatpush1.msra.mxu0 0.0
      %451 = vmatprep.subr.mxu0 0.0
      %452 = vmatpush1.msra.mxu0 0.0
      %453 = vmatprep.subr.mxu0 0.0
      %454 = vmatpush1.msra.mxu0 0.0
      %455 = vmatprep.subr.mxu0 0.0
      %456 = vmatpush1.msra.mxu0 0.0
      %457 = vmatprep.subr.mxu0 0.0
      %458 = vmatpush1.msra.mxu0 0.0
      %459 = vmatprep.subr.mxu0 0.0
      %460 = vmatpush1.msra.mxu0 0.0
      %461 = vmatprep.subr.mxu0 0.0
      %462 = vmatpush1.msra.mxu0 0.0
      %463 = vmatprep.subr.mxu0 0.0
      %464 = vmatpush1.msra.mxu0 0.0
      %465 = vmatprep.subr.mxu0 0.0
      %466 = vmatpush1.msra.mxu0 0.0
      %467 = vmatprep.subr.mxu0 0.0
      %468 = vmatpush1.msra.mxu0 0.0
      %469 = vmatprep.subr.mxu0 0.0
      %470 = vmatpush1.msra.mxu0 0.0
      %471 = vmatprep.subr.mxu0 0.0
      %472 = vmatpush1.msra.mxu0 0.0
      %473 = vmatprep.subr.mxu0 0.0
      %474 = vmatpush1.msra.mxu0 0.0
      %475 = vmatprep.subr.mxu0 0.0
      %476 = vmatpush1.msra.mxu0 0.0
      %477 = vmatprep.subr.mxu0 0.0
      %478 = vmatpush1.msra.mxu0 0.0
      %479 = vmatprep.subr.mxu0 0.0
      %480 = vmatpush1.msra.mxu0 0.0
      %481 = vmatprep.subr.mxu0 0.0
      %482 = vmatpush1.msra.mxu0 0.0
      %483 = vmatprep.subr.mxu0 0.0
      %484 = vmatpush1.msra.mxu0 0.0
      %485 = vmatprep.subr.mxu0 0.0
      %486 = vmatpush1.msra.mxu0 0.0
      %487 = vmatprep.subr.mxu0 0.0
      %488 = vmatpush1.msra.mxu0 0.0
      %489 = vmatprep.subr.mxu0 0.0
      %490 = vmatpush1.msra.mxu0 0.0
      %491 = vmatprep.subr.mxu0 0.0
      %492 = vmatpush1.msra.mxu0 0.0
      %493 = vmatprep.subr.mxu0 0.0
      %494 = vmatpush1.msra.mxu0 0.0
      %495 = vmatprep.subr.mxu0 0.0
      %496 = vmatpush1.msra.mxu0 0.0
      %497 = vmatprep.subr.mxu0 0.0
      %498 = vmatpush1.msra.mxu0 0.0
      %499 = vmatprep.subr.mxu0 0.0
      %500 = vmatpush1.msra.mxu0 0.0
      %501 = vmatprep.subr.mxu0 0.0
      %502 = vmatpush1.msra.mxu0 0.0
      %503 = vmatprep.subr.mxu0 0.0
      %504 = vmatpush1.msra.mxu0 0.0
      %505 = vmatprep.subr.mxu0 0.0
      %506 = vmatpush1.msra.mxu0 0.0
      %507 = vmatprep.subr.mxu0 0.0
      %508 = vmatpush1.msra.mxu0 0.0
      %509 = vmatprep.mubr.f32.mxu0 0.0
      %510 = vmatmul.mubr.f32.gmra.mrb[0].mxu0 %v443
      %v511 = vpop.f32.mrb[0].mxu0
      %v512 = vadd.f32 0.0, %v511
      %v513 = vpop.f32.mrb[0].mxu0
      %514 = vdwg.mxu0
      %v515 = vadd.f32 %v408, %v512
      %516 = vst.msk [vmem:[#allocation2] sm:$0xff] %vm209, %v515
      %p517 = scmp.eq.s32.totalorder %s19, 1
      // Predicated region
      $region37: #{krasulina_step.1} parent=31 // pred_check
        %p518 = pneg %p517
      $region38: #{krasulina_step.1} parent=31 // pred_check_branch
        %520 = sbr.rel (%p518) target = $region40
      $region39: #{krasulina_step.1} parent=31 // pred_region
        %v521 = vld [vmem:[#allocation2] sm:$0xff]
        %522 = vst.msk [vmem:[%s196] sm:$0xff] %vm209, %v521
      $region40: #{krasulina_step.1} parent=31 // pred_fallthru
        _
      %p523 = scmp.lt.s32.totalorder %s18, 1
      %s524 = scalar_select %p523, %s18, 1
      %s525 = smul.addr %s524, 8
      %s526 = scalar_lea.vmem %s3, %s525
      // Predicated region
      $region41: #{krasulina_step.1} parent=31 // pred_check
        %p527 = pneg %p116
      $region42: #{krasulina_step.1} parent=31 // pred_check_branch
        %529 = sbr.rel (%p527) target = $region44
      $region43: #{krasulina_step.1} parent=31 // pred_region
        _
      $region44: #{krasulina_step.1} parent=31 // pred_fallthru
        _
    $region32: #{krasulina_step.1} parent=5 // pred_fallthru
      _
    %p530 = scmp.le.s32.totalorder 2, %s9
    // Predicated region
    $region45: #{krasulina_step.1} parent=5 // pred_check
      %p531 = pneg %p530
    $region46: #{krasulina_step.1} parent=5 // pred_check_branch
      %533 = sbr.rel (%p531) target = $region48
    $region47: #{krasulina_step.1} parent=5 // pred_region
      %s534 = ssub.s32 %s9, 2
      // Predicated region
      $region49: #{krasulina_step.1} parent=47 // pred_check
        %p535 = pneg %p122
      $region50: #{krasulina_step.1} parent=47 // pred_check_branch
        %537 = sbr.rel (%p535) target = $region52
      $region51: #{krasulina_step.1} parent=47 // pred_region
        %p538 = scmp.lt.s32.totalorder %s20, 1
        %s539 = scalar_select %p538, %s20, 1
        %s540 = smul.addr %s539, 8
        %s541 = scalar_lea.vmem %s3, %s540
      $region52: #{krasulina_step.1} parent=47 // pred_fallthru
        _
    $region48: #{krasulina_step.1} parent=5 // pred_fallthru
      _
  $region6: #{krasulina_step.1} parent=0 // loop_footer
    %s13 = sadd.s32 1, %s9
  $region7: #{krasulina_step.1} parent=0 // loop_footer_branch
    %8 = sbr.rel target = $region3
  $region8: #{krasulina_step.1} parent=0 // loop_exit
    _

</llo_original>
